<compile_context>
chip_gen: v7x
topology: tpu7x:2x2x1
jax: 0.10.0
libtpu: 0.0.40
codegen_flags: <defaults>
</compile_context>

<pallas_src>
import functools

import numpy as np
import jax
import jax.numpy as jnp
from jax.experimental import pallas as pl
from jax.experimental.pallas import tpu as pltpu


# ------------------------------------------------------------------
# Bilinear interpolation matrix (PyTorch F.interpolate, align_corners=False)
# ------------------------------------------------------------------
def _bilinear_matrix(out_size, in_size):
    m = np.zeros((out_size, in_size), np.float32)
    if in_size == 1:
        m[:, 0] = 1.0
        return m
    scale = in_size / out_size
    for o in range(out_size):
        src = max((o + 0.5) * scale - 0.5, 0.0)
        i0 = min(int(np.floor(src)), in_size - 1)
        i1 = min(i0 + 1, in_size - 1)
        l1 = src - i0
        m[o, i0] += 1.0 - l1
        m[o, i1] += l1
    return m


# ------------------------------------------------------------------
# Fused kernel: mean -> linear -> softmax -> prompt weighted sum ->
#               Kron up-sample into a padded flat frame -> 3x3 conv (one matmul)
#               -> lane-dense flat store
# grid = (B, n_h):  batch ("parallel") x H-row mean chunks ("arbitrary")
# ------------------------------------------------------------------
def _prompt_gen_kernel(x_ref, wlin_ref, blin_ref, p_ref, mkron_ref, w9_ref,
                       o_ref, emb_acc, fbuf, x9buf,
                       *, L, D, H, Wf, inv_hw):
    # x_ref:     (1, C, h_tile, W)      wlin_ref: (C, L)     blin_ref: (1, L)
    # p_ref:     (L, D, ps*ps)          mkron_ref:(ps*ps, Hf*Wf)
    # w9_ref:    (D, 9*D)               o_ref:    (1, D, H*Wf)
    # emb_acc:   VMEM (1, C) f32        fbuf: VMEM (D, Hf*Wf)  x9buf: VMEM (9D, H*Wf)
    k = pl.program_id(1)

    # ---- K1: tiled spatial-sum accumulation (reduction over the row grid axis)
    @pl.when(k == 0)
    def _init():
        emb_acc[...] = jnp.zeros_like(emb_acc)

    part = jnp.sum(x_ref[...], axis=-1)                      # (1, C, h_tile)
    emb_acc[...] += jnp.sum(part, axis=-1)                   # (1, C)

    # ---- heavy tail: only on the last row chunk of this batch element
    @pl.when(k == pl.num_programs(1) - 1)
    def _finalize():
        emb = emb_acc[...] * inv_hw                          # (1, C)
        logits = jnp.dot(emb, wlin_ref[...],
                         preferred_element_type=jnp.float32) + blin_ref[...]
        m = jnp.max(logits, axis=-1, keepdims=True)
        e = jnp.exp(logits - m)
        wts = e / jnp.sum(e, axis=-1, keepdims=True)         # (1, L)

        # weighted prompt sum over L (weights live in vregs -> VPU broadcast-MACs)
        wsum = p_ref[0] * wts[:, 0:1]
        for l in range(1, L):
            wsum = wsum + p_ref[l] * wts[:, l:l + 1]         # (D, ps*ps)

        # bilinear up-sample + zero padding as ONE MXU matmul, written straight
        # into the flat padded frame (layout: row-major (Hf, Wf) on the lanes)
        fbuf[...] = jnp.dot(wsum, mkron_ref[...],
                            preferred_element_type=jnp.float32)   # (D, Hf*Wf)

        # 3x3 conv, stride 1, pad 1 (padding baked into the zero borders of the
        # frame): stack 9 shifted flat-frame views along the contraction dim
        # and do a single MXU matmul with the tap-packed weights.
        HWf = H * Wf
        for t in range(9):
            kh, kw = divmod(t, 3)
            s = kh * Wf + kw
            x9buf[t * D:(t + 1) * D, :] = fbuf[:, s:s + HWf]

        acc = jnp.dot(w9_ref[...], x9buf[...],
                      preferred_element_type=jnp.float32)         # (D, H*Wf)

        # single lane-dense bulk store; the Wf-W wraparound columns are cropped
        # by the caller
        o_ref[0] = acc.astype(o_ref.dtype)


def _pick_h_tile(C, H, W, budget_bytes=4 << 20):
    """Largest H-row block (8-aligned or full H) whose x tile fits the budget."""
    if C * H * W * 4 <= budget_bytes:
        return H
    cands = [t for t in range(8, H, 8) if H % t == 0]
    fitting = [t for t in cands if C * t * W * 4 <= budget_bytes]
    if fitting:
        return max(fitting)
    return min(cands) if cands else H


def prompt_gen_block(x, prompt_param, w_lin, b_lin, w_conv):
    """x: (B, C=lin_dim, H, W) NCHW  ->  (B, prompt_dim, H, W) NCHW."""
    B, C, H, W = x.shape
    L, D, ps, _ = prompt_param.shape

    Wf = ((W + 2 + 7) // 8) * 8          # padded flat-frame width (>= W + 2)
    Hf = H + 3                           # top pad + bottom pad + slack row
    # Invariants the shifted-slice conv relies on (zero borders baked into Mkron):
    assert Wf >= W + 2 and Wf % 8 == 0
    assert (H + 2) * Wf + 2 <= Hf * Wf   # all 9 shifted slices stay inside fbuf

    h_tile = _pick_h_tile(C, H, W)
    n_h = H // h_tile

    # Host-precomputed bilinear + zero-padding Kronecker matrix:
    #   Mkron[i*ps + j, hp*Wf + wp] = mhp[hp, i] * mwp[wp, j]
    mh = _bilinear_matrix(H, ps)
    mw = _bilinear_matrix(W, ps)
    mhp = np.zeros((Hf, ps), np.float32)
    mhp[1:H + 1] = mh                    # row 0 / rows >= H+1 are the zero pad
    mwp = np.zeros((Wf, ps), np.float32)
    mwp[1:W + 1] = mw                    # col 0 / cols >= W+1 are the zero pad
    mkron = jnp.asarray(np.kron(mhp, mwp).T)                 # (ps*ps, Hf*Wf)

    p_flat = prompt_param.reshape(L, D, ps * ps)             # lane-dense prompt
    w9 = jnp.transpose(w_conv, (0, 2, 3, 1)).reshape(D, 9 * D)  # taps -> K dim

    kernel = functools.partial(_prompt_gen_kernel, L=L, D=D, H=H, Wf=Wf,
                               inv_hw=1.0 / (H * W))

    # explicit VMEM budget from the actual working set (v7x-safe cap of 48 MiB)
    xblk = C * h_tile * W * 4
    oblk = D * H * Wf * 4
    par = (C * L + L + L * D * ps * ps + ps * ps * Hf * Wf + 9 * D * D) * 4
    scr = (C + D * Hf * Wf + 9 * D * H * Wf) * 4
    vmem_need = 3 * xblk + 2 * oblk + 2 * par + scr
    vmem_limit = int(min(max(2 * vmem_need, 16 << 20), 48 << 20))

    flops = B * (C * H * W + 2 * C * L + 2 * L * D * ps * ps
                 + 2 * D * ps * ps * Hf * Wf + 2 * 9 * D * D * H * Wf)
    bytes_accessed = 4 * (B * C * H * W + C * L + L + L * D * ps * ps
                          + ps * ps * Hf * Wf + 9 * D * D + B * D * H * Wf)

    x_spec_kwargs = {}
    if n_h >= 3:
        # deeper input buffering hides the HBM restart behind the heavy tail (v5e)
        x_spec_kwargs["pipeline_mode"] = pl.Buffered(3)

    out_flat = pl.pallas_call(
        kernel,
        out_shape=jax.ShapeDtypeStruct((B, D, H * Wf), jnp.float32),
        grid_spec=pltpu.PrefetchScalarGridSpec(
            num_scalar_prefetch=0,
            grid=(B, n_h),
            in_specs=[
                pl.BlockSpec((1, C, h_tile, W), lambda b, k: (b, 0, k, 0),
                             **x_spec_kwargs),
                pl.BlockSpec((C, L), lambda b, k: (0, 0)),
                pl.BlockSpec((1, L), lambda b, k: (0, 0)),
                pl.BlockSpec((L, D, ps * ps), lambda b, k: (0, 0, 0)),
                pl.BlockSpec((ps * ps, Hf * Wf), lambda b, k: (0, 0)),
                pl.BlockSpec((D, 9 * D), lambda b, k: (0, 0)),
            ],
            out_specs=pl.BlockSpec((1, D, H * Wf), lambda b, k: (b, 0, 0)),
            scratch_shapes=[pltpu.VMEM((1, C), jnp.float32),
                            pltpu.VMEM((D, Hf * Wf), jnp.float32),
                            pltpu.VMEM((9 * D, H * Wf), jnp.float32)],
        ),
        compiler_params=pltpu.CompilerParams(
            dimension_semantics=("parallel", "arbitrary"),
            vmem_limit_bytes=vmem_limit),
        cost_estimate=pl.CostEstimate(flops=flops, transcendentals=B * L,
                                      bytes_accessed=bytes_accessed),
    )(x, w_lin, b_lin, p_flat, mkron, w9)

    # lane-dense kernel output -> NCHW; a caller-side reshape/crop is cheaper
    # than H masked per-row stores inside the kernel.
    return out_flat.reshape(B, D, H, Wf)[:, :, :, :W]


# ------------------------------------------------------------------
# Pure-numpy reference (same bilinear matrices) for a sanity check
# ------------------------------------------------------------------
def _reference(x, prompt_param, w_lin, b_lin, w_conv, mh, mw):
    x = np.asarray(x, np.float64)
    P = np.asarray(prompt_param, np.float64)
    wl = np.asarray(w_lin, np.float64)
    bl = np.asarray(b_lin, np.float64)
    wc = np.asarray(w_conv, np.float64)
    mh = np.asarray(mh, np.float64)
    mw = np.asarray(mw, np.float64)
    B, C, H, W = x.shape
    L, D, ps, _ = P.shape
    emb = x.mean(axis=(2, 3))
    logits = emb @ wl + bl
    e = np.exp(logits - logits.max(-1, keepdims=True))
    wts = e / e.sum(-1, keepdims=True)
    p = np.einsum('bl,ldij->bdij', wts, P)
    p = np.einsum('hi,bdij,wj->bdhw', mh, p, mw)
    pp = np.pad(p, ((0, 0), (0, 0), (1, 1), (1, 1)))
    out = np.zeros((B, D, H, W))
    for kh in range(3):
        for kw in range(3):
            out += np.einsum('oc,bchw->bohw', wc[:, :, kh, kw],
                             pp[:, :, kh:kh + H, kw:kw + W])
    return out


if __name__ == "__main__":
    # small shapes consistent with the module: lin_dim == input channels
    B, lin_dim, H, W = 2, 16, 16, 16
    prompt_dim, prompt_len, prompt_size = 8, 5, 8

    key = jax.random.PRNGKey(0)
    kp, kw, kb, kc, kx = jax.random.split(key, 5)

    # deterministic synthetic parameters (shapes from PromptGenBlock.__init__)
    prompt_param = jax.random.uniform(
        kp, (prompt_len, prompt_dim, prompt_size, prompt_size), jnp.float32)
    bound = 1.0 / np.sqrt(lin_dim)
    w_lin = jax.random.uniform(kw, (lin_dim, prompt_len), jnp.float32, -bound, bound)
    b_lin = jax.random.uniform(kb, (1, prompt_len), jnp.float32, -bound, bound)
    cbound = 1.0 / np.sqrt(prompt_dim * 9)
    w_conv = jax.random.uniform(kc, (prompt_dim, prompt_dim, 3, 3), jnp.float32,
                                -cbound, cbound)                 # (Cout, Cin, kh, kw)

    x = jax.random.uniform(kx, (B, lin_dim, H, W), jnp.float32)  # NCHW

    out = prompt_gen_block(x, prompt_param, w_lin, b_lin, w_conv)
    out = jax.block_until_ready(out)
    assert out.shape == (B, prompt_dim, H, W)

    ref = _reference(x, prompt_param, w_lin, b_lin, w_conv,
                     _bilinear_matrix(H, prompt_size), _bilinear_matrix(W, prompt_size))
    np.testing.assert_allclose(np.asarray(out), ref, atol=5e-3, rtol=1e-3)

    print("KERNEL_OK")
</pallas_src>

<mosaic_0001>
module attributes {stable_mosaic.version = 11 : i64} {
  func.func @_prompt_gen_kernel(%arg0: i32, %arg1: i32, %arg2: memref<1x16x16x16xf32, #tpu.memory_space<vmem>>, %arg3: memref<16x5xf32, #tpu.memory_space<vmem>>, %arg4: memref<1x5xf32, #tpu.memory_space<vmem>>, %arg5: memref<5x8x64xf32, #tpu.memory_space<vmem>>, %arg6: memref<64x456xf32, #tpu.memory_space<vmem>>, %arg7: memref<8x72xf32, #tpu.memory_space<vmem>>, %arg8: memref<1x8x384xf32, #tpu.memory_space<vmem>>, %arg9: memref<1x16xf32, #tpu.memory_space<vmem>>, %arg10: memref<8x456xf32, #tpu.memory_space<vmem>>, %arg11: memref<72x384xf32, #tpu.memory_space<vmem>>) attributes {dimension_semantics = [#tpu.dimension_semantics<parallel>, #tpu.dimension_semantics<arbitrary>], iteration_bounds = array<i64: 2, 1>, scalar_prefetch = 0 : i64, scratch_operands = 3 : i64, tpu.core_type = #tpu.core_type<tc>, window_params = [{transform_indices = @transform_0, window_bounds = array<i64: 1, 16, 16, 16>}, {pipeline_mode = #tpu.pipeline_mode<synchronous>, transform_indices = @transform_1, window_bounds = array<i64: 16, 5>}, {pipeline_mode = #tpu.pipeline_mode<synchronous>, transform_indices = @transform_2, window_bounds = array<i64: 1, 5>}, {pipeline_mode = #tpu.pipeline_mode<synchronous>, transform_indices = @transform_3, window_bounds = array<i64: 5, 8, 64>}, {pipeline_mode = #tpu.pipeline_mode<synchronous>, transform_indices = @transform_4, window_bounds = array<i64: 64, 456>}, {pipeline_mode = #tpu.pipeline_mode<synchronous>, transform_indices = @transform_5, window_bounds = array<i64: 8, 72>}, {transform_indices = @transform_6, window_bounds = array<i64: 1, 8, 384>}]} {
    %c0_i32 = arith.constant 0 : i32
    %0 = arith.cmpi eq, %arg1, %c0_i32 : i32
    %1 = arith.extui %0 : i1 to i32
    %c0_i32_0 = arith.constant 0 : i32
    %2 = arith.cmpi ne, %1, %c0_i32_0 : i32
    scf.if %2 {
      %cst_11 = arith.constant 0.000000e+00 : f32
      %12 = vector.broadcast %cst_11 : f32 to vector<1x16xf32>
      %c0_12 = arith.constant 0 : index
      %c0_13 = arith.constant 0 : index
      %13 = vector.load %arg9[%c0_12, %c0_13] : memref<1x16xf32, #tpu.memory_space<vmem>>, vector<1x16xf32>
      tpu.vector_store %arg9[%c0_12, %c0_13], %12 {strides = array<i32>} : memref<1x16xf32, #tpu.memory_space<vmem>>, vector<1x16xf32>,
    } else {
    }
    %c0 = arith.constant 0 : index
    %c0_1 = arith.constant 0 : index
    %c0_2 = arith.constant 0 : index
    %c0_3 = arith.constant 0 : index
    %3 = vector.load %arg2[%c0, %c0_1, %c0_2, %c0_3] : memref<1x16x16x16xf32, #tpu.memory_space<vmem>>, vector<1x16x16x16xf32>
    %cst = arith.constant dense<0.000000e+00> : vector<1x16x16xf32>
    %4 = vector.multi_reduction <add>, %3, %cst [3] : vector<1x16x16x16xf32> to vector<1x16x16xf32>
    %c0_4 = arith.constant 0 : index
    %c0_5 = arith.constant 0 : index
    %5 = vector.load %arg9[%c0_4, %c0_5] : memref<1x16xf32, #tpu.memory_space<vmem>>, vector<1x16xf32>
    %cst_6 = arith.constant dense<0.000000e+00> : vector<1x16xf32>
    %6 = vector.multi_reduction <add>, %4, %cst_6 [2] : vector<1x16x16xf32> to vector<1x16xf32>
    %7 = arith.addf %5, %6 : vector<1x16xf32>
    %c0_7 = arith.constant 0 : index
    %c0_8 = arith.constant 0 : index
    %8 = vector.load %arg9[%c0_7, %c0_8] : memref<1x16xf32, #tpu.memory_space<vmem>>, vector<1x16xf32>
    tpu.vector_store %arg9[%c0_7, %c0_8], %7 {strides = array<i32>} : memref<1x16xf32, #tpu.memory_space<vmem>>, vector<1x16xf32>,
    %c0_i32_9 = arith.constant 0 : i32
    %9 = arith.cmpi eq, %arg1, %c0_i32_9 : i32
    %10 = arith.extui %9 : i1 to i32
    %c0_i32_10 = arith.constant 0 : i32
    %11 = arith.cmpi ne, %10, %c0_i32_10 : i32
    scf.if %11 {
      %c0_11 = arith.constant 0 : index
      %c0_12 = arith.constant 0 : index
      %12 = vector.load %arg9[%c0_11, %c0_12] : memref<1x16xf32, #tpu.memory_space<vmem>>, vector<1x16xf32>
      %cst_13 = arith.constant 3.906250e-03 : f32
      %13 = vector.broadcast %cst_13 : f32 to vector<1x16xf32>
      %14 = arith.mulf %12, %13 : vector<1x16xf32>
      %c0_14 = arith.constant 0 : index
      %c0_15 = arith.constant 0 : index
      %15 = vector.load %arg3[%c0_14, %c0_15] : memref<16x5xf32, #tpu.memory_space<vmem>>, vector<16x5xf32>
      %cst_16 = arith.constant dense<0.000000e+00> : vector<1x5xf32>
      %16 = tpu.matmul %14, %15, %cst_16 {dimension_numbers = #tpu.dot_dimension_numbers<[1], [0], [0], [1], [0, 0, 1, 1], [], []>} : vector<1x16xf32>, vector<16x5xf32>, vector<1x5xf32> -> vector<1x5xf32>
      %c0_17 = arith.constant 0 : index
      %c0_18 = arith.constant 0 : index
      %17 = vector.load %arg4[%c0_17, %c0_18] : memref<1x5xf32, #tpu.memory_space<vmem>>, vector<1x5xf32>
      %18 = arith.addf %16, %17 : vector<1x5xf32>
      %cst_19 = arith.constant dense<0xFF800000> : vector<1xf32>
      %19 = vector.multi_reduction <maximumf>, %18, %cst_19 [1] : vector<1x5xf32> to vector<1xf32>
      %20 = vector.shape_cast %19 : vector<1xf32> to vector<1x1xf32>
      %21 = vector.broadcast %20 : vector<1x1xf32> to vector<1x5xf32>
      %22 = arith.subf %18, %21 : vector<1x5xf32>
      %23 = math.exp %22 : vector<1x5xf32>
      %cst_20 = arith.constant dense<0.000000e+00> : vector<1xf32>
      %24 = vector.multi_reduction <add>, %23, %cst_20 [1] : vector<1x5xf32> to vector<1xf32>
      %25 = vector.shape_cast %24 : vector<1xf32> to vector<1x1xf32>
      %26 = vector.broadcast %25 : vector<1x1xf32> to vector<1x5xf32>
      %27 = arith.divf %23, %26 : vector<1x5xf32>
      %c0_21 = arith.constant 0 : index
      %c0_22 = arith.constant 0 : index
      %c0_23 = arith.constant 0 : index
      %28 = vector.load %arg5[%c0_21, %c0_22, %c0_23] : memref<5x8x64xf32, #tpu.memory_space<vmem>>, vector<1x8x64xf32>
      %29 = vector.shape_cast %28 : vector<1x8x64xf32> to vector<8x64xf32>
      %30 = vector.extract_strided_slice %27 {offsets = [0, 0], sizes = [1, 1], strides = [1, 1]} : vector<1x5xf32> to vector<1x1xf32>
      %31 = vector.broadcast %30 : vector<1x1xf32> to vector<8x64xf32>
      %32 = arith.mulf %29, %31 : vector<8x64xf32>
      %c1 = arith.constant 1 : index
      %c0_24 = arith.constant 0 : index
      %c0_25 = arith.constant 0 : index
      %33 = vector.load %arg5[%c1, %c0_24, %c0_25] : memref<5x8x64xf32, #tpu.memory_space<vmem>>, vector<1x8x64xf32>
      %34 = vector.shape_cast %33 : vector<1x8x64xf32> to vector<8x64xf32>
      %35 = vector.extract_strided_slice %27 {offsets = [0, 1], sizes = [1, 1], strides = [1, 1]} : vector<1x5xf32> to vector<1x1xf32>
      %36 = vector.broadcast %35 : vector<1x1xf32> to vector<8x64xf32>
      %37 = arith.mulf %34, %36 : vector<8x64xf32>
      %38 = arith.addf %32, %37 : vector<8x64xf32>
      %c2 = arith.constant 2 : index
      %c0_26 = arith.constant 0 : index
      %c0_27 = arith.constant 0 : index
      %39 = vector.load %arg5[%c2, %c0_26, %c0_27] : memref<5x8x64xf32, #tpu.memory_space<vmem>>, vector<1x8x64xf32>
      %40 = vector.shape_cast %39 : vector<1x8x64xf32> to vector<8x64xf32>
      %41 = vector.extract_strided_slice %27 {offsets = [0, 2], sizes = [1, 1], strides = [1, 1]} : vector<1x5xf32> to vector<1x1xf32>
      %42 = vector.broadcast %41 : vector<1x1xf32> to vector<8x64xf32>
      %43 = arith.mulf %40, %42 : vector<8x64xf32>
      %44 = arith.addf %38, %43 : vector<8x64xf32>
      %c3 = arith.constant 3 : index
      %c0_28 = arith.constant 0 : index
      %c0_29 = arith.constant 0 : index
      %45 = vector.load %arg5[%c3, %c0_28, %c0_29] : memref<5x8x64xf32, #tpu.memory_space<vmem>>, vector<1x8x64xf32>
      %46 = vector.shape_cast %45 : vector<1x8x64xf32> to vector<8x64xf32>
      %47 = vector.extract_strided_slice %27 {offsets = [0, 3], sizes = [1, 1], strides = [1, 1]} : vector<1x5xf32> to vector<1x1xf32>
      %48 = vector.broadcast %47 : vector<1x1xf32> to vector<8x64xf32>
      %49 = arith.mulf %46, %48 : vector<8x64xf32>
      %50 = arith.addf %44, %49 : vector<8x64xf32>
      %c4 = arith.constant 4 : index
      %c0_30 = arith.constant 0 : index
      %c0_31 = arith.constant 0 : index
      %51 = vector.load %arg5[%c4, %c0_30, %c0_31] : memref<5x8x64xf32, #tpu.memory_space<vmem>>, vector<1x8x64xf32>
      %52 = vector.shape_cast %51 : vector<1x8x64xf32> to vector<8x64xf32>
      %53 = vector.extract_strided_slice %27 {offsets = [0, 4], sizes = [1, 1], strides = [1, 1]} : vector<1x5xf32> to vector<1x1xf32>
      %54 = vector.broadcast %53 : vector<1x1xf32> to vector<8x64xf32>
      %55 = arith.mulf %52, %54 : vector<8x64xf32>
      %56 = arith.addf %50, %55 : vector<8x64xf32>
      %c0_32 = arith.constant 0 : index
      %c0_33 = arith.constant 0 : index
      %57 = vector.load %arg6[%c0_32, %c0_33] : memref<64x456xf32, #tpu.memory_space<vmem>>, vector<64x456xf32>
      %cst_34 = arith.constant dense<0.000000e+00> : vector<8x456xf32>
      %58 = tpu.matmul %56, %57, %cst_34 {dimension_numbers = #tpu.dot_dimension_numbers<[1], [0], [0], [1], [0, 0, 1, 1], [], []>} : vector<8x64xf32>, vector<64x456xf32>, vector<8x456xf32> -> vector<8x456xf32>
      %c0_35 = arith.constant 0 : index
      %c0_36 = arith.constant 0 : index
      %59 = vector.load %arg10[%c0_35, %c0_36] : memref<8x456xf32, #tpu.memory_space<vmem>>, vector<8x456xf32>
      tpu.vector_store %arg10[%c0_35, %c0_36], %58 {strides = array<i32>} : memref<8x456xf32, #tpu.memory_space<vmem>>, vector<8x456xf32>,
      %c0_37 = arith.constant 0 : index
      %c0_38 = arith.constant 0 : index
      %60 = vector.load %arg10[%c0_37, %c0_38] : memref<8x456xf32, #tpu.memory_space<vmem>>, vector<8x384xf32>
      %c0_39 = arith.constant 0 : index
      %c0_40 = arith.constant 0 : index
      %61 = vector.load %arg11[%c0_39, %c0_40] : memref<72x384xf32, #tpu.memory_space<vmem>>, vector<8x384xf32>
      tpu.vector_store %arg11[%c0_39, %c0_40], %60 {strides = array<i32>} : memref<72x384xf32, #tpu.memory_space<vmem>>, vector<8x384xf32>,
      %c0_41 = arith.constant 0 : index
      %c1_42 = arith.constant 1 : index
      %62 = vector.load %arg10[%c0_41, %c1_42] : memref<8x456xf32, #tpu.memory_space<vmem>>, vector<8x384xf32>
      %c8 = arith.constant 8 : index
      %c0_43 = arith.constant 0 : index
      %63 = vector.load %arg11[%c8, %c0_43] : memref<72x384xf32, #tpu.memory_space<vmem>>, vector<8x384xf32>
      tpu.vector_store %arg11[%c8, %c0_43], %62 {strides = array<i32>} : memref<72x384xf32, #tpu.memory_space<vmem>>, vector<8x384xf32>,
      %c0_44 = arith.constant 0 : index
      %c2_45 = arith.constant 2 : index
      %64 = vector.load %arg10[%c0_44, %c2_45] : memref<8x456xf32, #tpu.memory_space<vmem>>, vector<8x384xf32>
      %c16 = arith.constant 16 : index
      %c0_46 = arith.constant 0 : index
      %65 = vector.load %arg11[%c16, %c0_46] : memref<72x384xf32, #tpu.memory_space<vmem>>, vector<8x384xf32>
      tpu.vector_store %arg11[%c16, %c0_46], %64 {strides = array<i32>} : memref<72x384xf32, #tpu.memory_space<vmem>>, vector<8x384xf32>,
      %c0_47 = arith.constant 0 : index
      %c24 = arith.constant 24 : index
      %66 = vector.load %arg10[%c0_47, %c24] : memref<8x456xf32, #tpu.memory_space<vmem>>, vector<8x384xf32>
      %c24_48 = arith.constant 24 : index
      %c0_49 = arith.constant 0 : index
      %67 = vector.load %arg11[%c24_48, %c0_49] : memref<72x384xf32, #tpu.memory_space<vmem>>, vector<8x384xf32>
      tpu.vector_store %arg11[%c24_48, %c0_49], %66 {strides = array<i32>} : memref<72x384xf32, #tpu.memory_space<vmem>>, vector<8x384xf32>,
      %c0_50 = arith.constant 0 : index
      %c25 = arith.constant 25 : index
      %68 = vector.load %arg10[%c0_50, %c25] : memref<8x456xf32, #tpu.memory_space<vmem>>, vector<8x384xf32>
      %c32 = arith.constant 32 : index
      %c0_51 = arith.constant 0 : index
      %69 = vector.load %arg11[%c32, %c0_51] : memref<72x384xf32, #tpu.memory_space<vmem>>, vector<8x384xf32>
      tpu.vector_store %arg11[%c32, %c0_51], %68 {strides = array<i32>} : memref<72x384xf32, #tpu.memory_space<vmem>>, vector<8x384xf32>,
      %c0_52 = arith.constant 0 : index
      %c26 = arith.constant 26 : index
      %70 = vector.load %arg10[%c0_52, %c26] : memref<8x456xf32, #tpu.memory_space<vmem>>, vector<8x384xf32>
      %c40 = arith.constant 40 : index
      %c0_53 = arith.constant 0 : index
      %71 = vector.load %arg11[%c40, %c0_53] : memref<72x384xf32, #tpu.memory_space<vmem>>, vector<8x384xf32>
      tpu.vector_store %arg11[%c40, %c0_53], %70 {strides = array<i32>} : memref<72x384xf32, #tpu.memory_space<vmem>>, vector<8x384xf32>,
      %c0_54 = arith.constant 0 : index
      %c48 = arith.constant 48 : index
      %72 = vector.load %arg10[%c0_54, %c48] : memref<8x456xf32, #tpu.memory_space<vmem>>, vector<8x384xf32>
      %c48_55 = arith.constant 48 : index
      %c0_56 = arith.constant 0 : index
      %73 = vector.load %arg11[%c48_55, %c0_56] : memref<72x384xf32, #tpu.memory_space<vmem>>, vector<8x384xf32>
      tpu.vector_store %arg11[%c48_55, %c0_56], %72 {strides = array<i32>} : memref<72x384xf32, #tpu.memory_space<vmem>>, vector<8x384xf32>,
      %c0_57 = arith.constant 0 : index
      %c49 = arith.constant 49 : index
      %74 = vector.load %arg10[%c0_57, %c49] : memref<8x456xf32, #tpu.memory_space<vmem>>, vector<8x384xf32>
      %c56 = arith.constant 56 : index
      %c0_58 = arith.constant 0 : index
      %75 = vector.load %arg11[%c56, %c0_58] : memref<72x384xf32, #tpu.memory_space<vmem>>, vector<8x384xf32>
      tpu.vector_store %arg11[%c56, %c0_58], %74 {strides = array<i32>} : memref<72x384xf32, #tpu.memory_space<vmem>>, vector<8x384xf32>,
      %c0_59 = arith.constant 0 : index
      %c50 = arith.constant 50 : index
      %76 = vector.load %arg10[%c0_59, %c50] : memref<8x456xf32, #tpu.memory_space<vmem>>, vector<8x384xf32>
      %c64 = arith.constant 64 : index
      %c0_60 = arith.constant 0 : index
      %77 = vector.load %arg11[%c64, %c0_60] : memref<72x384xf32, #tpu.memory_space<vmem>>, vector<8x384xf32>
      tpu.vector_store %arg11[%c64, %c0_60], %76 {strides = array<i32>} : memref<72x384xf32, #tpu.memory_space<vmem>>, vector<8x384xf32>,
      %c0_61 = arith.constant 0 : index
      %c0_62 = arith.constant 0 : index
      %78 = vector.load %arg7[%c0_61, %c0_62] : memref<8x72xf32, #tpu.memory_space<vmem>>, vector<8x72xf32>
      %c0_63 = arith.constant 0 : index
      %c0_64 = arith.constant 0 : index
      %79 = vector.load %arg11[%c0_63, %c0_64] : memref<72x384xf32, #tpu.memory_space<vmem>>, vector<72x384xf32>
      %cst_65 = arith.constant dense<0.000000e+00> : vector<8x384xf32>
      %80 = tpu.matmul %78, %79, %cst_65 {dimension_numbers = #tpu.dot_dimension_numbers<[1], [0], [0], [1], [0, 0, 1, 1], [], []>} : vector<8x72xf32>, vector<72x384xf32>, vector<8x384xf32> -> vector<8x384xf32>
      %c0_66 = arith.constant 0 : index
      %c0_67 = arith.constant 0 : index
      %c0_68 = arith.constant 0 : index
      %81 = vector.load %arg8[%c0_66, %c0_67, %c0_68] : memref<1x8x384xf32, #tpu.memory_space<vmem>>, vector<1x8x384xf32>
      %82 = vector.shape_cast %81 : vector<1x8x384xf32> to vector<8x384xf32>
      %83 = vector.shape_cast %80 : vector<8x384xf32> to vector<1x8x384xf32>
      tpu.vector_store %arg8[%c0_66, %c0_67, %c0_68], %83 {strides = array<i32>} : memref<1x8x384xf32, #tpu.memory_space<vmem>>, vector<1x8x384xf32>,
    } else {
    }
    return
  }
  func.func @transform_0(%arg0: i32, %arg1: i32) -> (i32, i32, i32, i32) {
    %c0_i32 = arith.constant 0 : i32
    %c0_i32_0 = arith.constant 0 : i32
    %c0_i32_1 = arith.constant 0 : i32
    return %arg0, %c0_i32, %arg1, %c0_i32_0 : i32, i32, i32, i32
  }
  func.func @transform_1(%arg0: i32, %arg1: i32) -> (i32, i32) {
    %c0_i32 = arith.constant 0 : i32
    %c0_i32_0 = arith.constant 0 : i32
    %c0_i32_1 = arith.constant 0 : i32
    return %c0_i32, %c0_i32_0 : i32, i32
  }
  func.func @transform_2(%arg0: i32, %arg1: i32) -> (i32, i32) {
    %c0_i32 = arith.constant 0 : i32
    %c0_i32_0 = arith.constant 0 : i32
    %c0_i32_1 = arith.constant 0 : i32
    return %c0_i32, %c0_i32_0 : i32, i32
  }
  func.func @transform_3(%arg0: i32, %arg1: i32) -> (i32, i32, i32) {
    %c0_i32 = arith.constant 0 : i32
    %c0_i32_0 = arith.constant 0 : i32
    %c0_i32_1 = arith.constant 0 : i32
    %c0_i32_2 = arith.constant 0 : i32
    return %c0_i32, %c0_i32_0, %c0_i32_1 : i32, i32, i32
  }
  func.func @transform_4(%arg0: i32, %arg1: i32) -> (i32, i32) {
    %c0_i32 = arith.constant 0 : i32
    %c0_i32_0 = arith.constant 0 : i32
    %c0_i32_1 = arith.constant 0 : i32
    return %c0_i32, %c0_i32_0 : i32, i32
  }
  func.func @transform_5(%arg0: i32, %arg1: i32) -> (i32, i32) {
    %c0_i32 = arith.constant 0 : i32
    %c0_i32_0 = arith.constant 0 : i32
    %c0_i32_1 = arith.constant 0 : i32
    return %c0_i32, %c0_i32_0 : i32, i32
  }
  func.func @transform_6(%arg0: i32, %arg1: i32) -> (i32, i32, i32) {
    %c0_i32 = arith.constant 0 : i32
    %c0_i32_0 = arith.constant 0 : i32
    %c0_i32_1 = arith.constant 0 : i32
    return %arg0, %c0_i32, %c0_i32_0 : i32, i32, i32
  }
}

</mosaic_0001>

<llo_original>
// kernel: tpu_custom_call.1
$region0: #{tpu_custom_call.1}
  #allocation0 [shape = 'u32[]', space=smem, size = 0x4, offset = 0x4, fixed_abs, tag = 'smem constant byte address 0x4 - core index']
  #allocation1 [shape = 'u32[144,128]{1,0:T(1,128)}', space=vmem, size = 0x12000, scoped, tag = 'internal scratch']
  #allocation2 [shape = 'f32[1,16]{1,0:T(1,128)}', space=vmem, size = 0x200, scoped, tag = 'scratch operand']
  #allocation3 [shape = 'f32[8,456]{1,0:T(8,128)}', space=vmem, size = 0x4000, scoped, tag = 'scratch operand']
  #allocation4 [shape = 'f32[72,384]{1,0:T(8,128)}', space=vmem, size = 0x1b000, scoped, tag = 'scratch operand']
  %s0 = inlined_call_operand.hbm [shape: f32[2,16,16,16], index: 0, kind: input, shape index: {}]
  %s1 = inlined_call_operand.vmem [shape: f32[16,5], index: 1, kind: input, shape index: {}]
  %s2 = inlined_call_operand.vmem [shape: f32[1,5], index: 2, kind: input, shape index: {}]
  %s3 = inlined_call_operand.hbm [shape: f32[5,8,64], index: 3, kind: input, shape index: {}]
  %s4 = inlined_call_operand.hbm [shape: f32[64,456], index: 4, kind: input, shape index: {}]
  %s5 = inlined_call_operand.vmem [shape: f32[8,72], index: 5, kind: input, shape index: {}]
  %s6 = inlined_call_operand.hbm [shape: f32[2,8,384], index: 6, kind: output, shape index: {}]
  %s7 = sld [smem:[#allocation0]]
  $region77: #{tpu_custom_call.1} parent=0
    _
  %s9 = ssub.s32 1, %s7
  %s10 = scalar_select 0, %s9, %s7
  $region1: #{tpu_custom_call.1} parent=0
    #allocation5 [shape = 'u8[262144]{0}', space=vmem, size = 0x40000, scoped, tag = 'input window, operand 0']
    #allocation6 [shape = 's32[2]{0}', space=sflag, size = 0x8, scoped, tag = 'scoped memory for tpu_custom_call.1']
    #allocation7 [shape = 's32[2]{0}', space=sflag, size = 0x8, scoped, tag = 'scoped memory for tpu_custom_call.1']
    #allocation8 [shape = 'u8[20480]{0}', space=vmem, size = 0x5000, scoped, tag = 'input window, operand 3, single buffered']
    #allocation9 [shape = 's32[1]{0}', space=sflag, size = 0x4, scoped, tag = 'scoped memory for tpu_custom_call.1']
    #allocation10 [shape = 'u8[131072]{0}', space=vmem, size = 0x20000, scoped, tag = 'input window, operand 4, single buffered']
    #allocation11 [shape = 'u8[24576]{0}', space=vmem, size = 0x6000, scoped, tag = 'output window, operand 0']
    %11 = vsyncpa [#allocation6], 0
    %s12 = scalar_lea.sflag [#allocation6], 1
    %13 = vsyncpa %s12, 0
    %14 = vsyncpa [#allocation9], 0
    %15 = vsyncpa [#allocation7], 0
    %s16 = scalar_lea.sflag [#allocation7], 1
    %17 = vsyncpa %s16, 0
    loop: start=0, step=1, limit=4
    $region2: #{tpu_custom_call.1} parent=1 // loop_pre_header
      _
    $region3: #{tpu_custom_call.1} parent=1 // loop_header
      %s19 = sphi 0, %s23
      %p20 = scmp.ge.s32.totalorder %s19, 4
      %s26 = sphi 0, %s38
      %s27 = sphi 0, %s34
      %s28 = sphi 0, %s26
      %s29 = sphi 0, %s27
      %s30 = sphi 0, %s28
      %s31 = sphi 0, %s29
      %s43 = sphi 0, %s45
      %s46 = sphi 0, %s43
      %s47 = sphi 0, %s46
      %s63 = sphi 0, %s47
      %s67 = sphi 0, %s67
      %s69 = sphi 0, %s67
      %s70 = sphi 0, %s69
      %s84 = sphi 0, %s70
      %s88 = sphi 0, %s88
      %s90 = sphi 0, %s88
      %s91 = sphi 0, %s90
      %s105 = sphi 0, %s91
      %s109 = sphi 0, %s109
      %s111 = sphi 0, %s109
      %s112 = sphi 0, %s111
      %s126 = sphi 0, %s112
      %s130 = sphi 0, %s130
      %s132 = sphi 0, %s130
      %s133 = sphi 0, %s132
      %s147 = sphi 0, %s133
      %s151 = sphi 0, %s151
      %s153 = sphi 0, %s151
      %s154 = sphi 0, %s153
      %s168 = sphi 0, %s154
      %s174 = sphi 0, %s176
      %s177 = sphi 0, %s174
      %s178 = sphi 0, %s177
      %s194 = sphi 0, %s178
    $region4: #{tpu_custom_call.1} parent=1 // loop_header_branch
      %22 = sbr.rel (%p20) target = $region8
    $region5: #{tpu_custom_call.1} parent=1 // loop_body
      %s24 = ssub.s32 %s19, 1
      %s25 = ssub.s32 %s19, 2
      %s32 = sadd.s32 1, %s27
      %p33 = scmp.ge.s32.totalorder %s32, 1
      %s34 = scalar_select %p33, 0, %s32
      %s35 = sadd.s32 1, %s26
      %s36 = scalar_select %p33, %s35, %s26
      %p37 = scmp.ge.s32.totalorder %s36, 2
      %s38 = scalar_select %p37, 0, %s36
      %s39 = ssub.s32 %s26, %s38
      %s40 = ssub.s32 %s27, %s34
      %s41 = sor.u32 %s39, %s40
      %p42 = scmp.eq.s32.totalorder %s41, 0
      %s44 = sadd.s32 %s43, 1
      %s45 = scalar_select %p42, %s43, %s44
      %p48 = pneg %p42
      %p49 = scmp.eq.s32.totalorder %s19, 1
      %p50 = por %p48, %p49
      %p51 = scmp.ne.s32.totalorder %s43, %s46
      %p52 = scmp.eq.s32.totalorder %s19, 0
      %p53 = por %p51, %p52
      %p54 = scmp.ne.s32.totalorder %s43, %s46
      %p55 = scmp.eq.s32.totalorder %s24, 1
      %p56 = por %p54, %p55
      %p57 = scmp.ne.s32.totalorder %s46, %s47
      %p58 = scmp.eq.s32.totalorder %s24, 0
      %p59 = por %p57, %p58
      %p60 = scmp.ne.s32.totalorder %s46, %s47
      %p61 = scmp.eq.s32.totalorder %s25, 1
      %p62 = por %p60, %p61
      %p64 = scmp.ne.s32.totalorder %s47, %s63
      %p65 = scmp.eq.s32.totalorder %s25, 0
      %p66 = por %p64, %p65
      %s68 = sadd.s32 %s67, 1
      %p71 = scmp.eq.s32.totalorder %s19, 1
      %p72 = scmp.ne.s32.totalorder %s67, %s69
      %p73 = scmp.eq.s32.totalorder %s19, 0
      %p74 = por %p72, %p73
      %p75 = scmp.ne.s32.totalorder %s67, %s69
      %p76 = scmp.eq.s32.totalorder %s24, 1
      %p77 = por %p75, %p76
      %p78 = scmp.ne.s32.totalorder %s69, %s70
      %p79 = scmp.eq.s32.totalorder %s24, 0
      %p80 = por %p78, %p79
      %p81 = scmp.ne.s32.totalorder %s69, %s70
      %p82 = scmp.eq.s32.totalorder %s25, 1
      %p83 = por %p81, %p82
      %p85 = scmp.ne.s32.totalorder %s70, %s84
      %p86 = scmp.eq.s32.totalorder %s25, 0
      %p87 = por %p85, %p86
      %s89 = sadd.s32 %s88, 1
      %p92 = scmp.eq.s32.totalorder %s19, 1
      %p93 = scmp.ne.s32.totalorder %s88, %s90
      %p94 = scmp.eq.s32.totalorder %s19, 0
      %p95 = por %p93, %p94
      %p96 = scmp.ne.s32.totalorder %s88, %s90
      %p97 = scmp.eq.s32.totalorder %s24, 1
      %p98 = por %p96, %p97
      %p99 = scmp.ne.s32.totalorder %s90, %s91
      %p100 = scmp.eq.s32.totalorder %s24, 0
      %p101 = por %p99, %p100
      %p102 = scmp.ne.s32.totalorder %s90, %s91
      %p103 = scmp.eq.s32.totalorder %s25, 1
      %p104 = por %p102, %p103
      %p106 = scmp.ne.s32.totalorder %s91, %s105
      %p107 = scmp.eq.s32.totalorder %s25, 0
      %p108 = por %p106, %p107
      %s110 = sadd.s32 %s109, 1
      %p113 = scmp.eq.s32.totalorder %s19, 1
      %p114 = scmp.ne.s32.totalorder %s109, %s111
      %p115 = scmp.eq.s32.totalorder %s19, 0
      %p116 = por %p114, %p115
      %p117 = scmp.ne.s32.totalorder %s109, %s111
      %p118 = scmp.eq.s32.totalorder %s24, 1
      %p119 = por %p117, %p118
      %p120 = scmp.ne.s32.totalorder %s111, %s112
      %p121 = scmp.eq.s32.totalorder %s24, 0
      %p122 = por %p120, %p121
      %p123 = scmp.ne.s32.totalorder %s111, %s112
      %p124 = scmp.eq.s32.totalorder %s25, 1
      %p125 = por %p123, %p124
      %p127 = scmp.ne.s32.totalorder %s112, %s126
      %p128 = scmp.eq.s32.totalorder %s25, 0
      %p129 = por %p127, %p128
      %s131 = sadd.s32 %s130, 1
      %p134 = scmp.eq.s32.totalorder %s19, 1
      %p135 = scmp.ne.s32.totalorder %s130, %s132
      %p136 = scmp.eq.s32.totalorder %s19, 0
      %p137 = por %p135, %p136
      %p138 = scmp.ne.s32.totalorder %s130, %s132
      %p139 = scmp.eq.s32.totalorder %s24, 1
      %p140 = por %p138, %p139
      %p141 = scmp.ne.s32.totalorder %s132, %s133
      %p142 = scmp.eq.s32.totalorder %s24, 0
      %p143 = por %p141, %p142
      %p144 = scmp.ne.s32.totalorder %s132, %s133
      %p145 = scmp.eq.s32.totalorder %s25, 1
      %p146 = por %p144, %p145
      %p148 = scmp.ne.s32.totalorder %s133, %s147
      %p149 = scmp.eq.s32.totalorder %s25, 0
      %p150 = por %p148, %p149
      %s152 = sadd.s32 %s151, 1
      %p155 = scmp.eq.s32.totalorder %s19, 1
      %p156 = scmp.ne.s32.totalorder %s151, %s153
      %p157 = scmp.eq.s32.totalorder %s19, 0
      %p158 = por %p156, %p157
      %p159 = scmp.ne.s32.totalorder %s151, %s153
      %p160 = scmp.eq.s32.totalorder %s24, 1
      %p161 = por %p159, %p160
      %p162 = scmp.ne.s32.totalorder %s153, %s154
      %p163 = scmp.eq.s32.totalorder %s24, 0
      %p164 = por %p162, %p163
      %p165 = scmp.ne.s32.totalorder %s153, %s154
      %p166 = scmp.eq.s32.totalorder %s25, 1
      %p167 = por %p165, %p166
      %p169 = scmp.ne.s32.totalorder %s154, %s168
      %p170 = scmp.eq.s32.totalorder %s25, 0
      %p171 = por %p169, %p170
      %s172 = ssub.s32 %s26, %s38
      %p173 = scmp.eq.s32.totalorder %s172, 0
      %s175 = sadd.s32 %s174, 1
      %s176 = scalar_select %p173, %s174, %s175
      %p179 = pneg %p173
      %p180 = scmp.eq.s32.totalorder %s19, 1
      %p181 = por %p179, %p180
      %p182 = scmp.ne.s32.totalorder %s174, %s177
      %p183 = scmp.eq.s32.totalorder %s19, 0
      %p184 = por %p182, %p183
      %p185 = scmp.ne.s32.totalorder %s174, %s177
      %p186 = scmp.eq.s32.totalorder %s24, 1
      %p187 = por %p185, %p186
      %p188 = scmp.ne.s32.totalorder %s177, %s178
      %p189 = scmp.eq.s32.totalorder %s24, 0
      %p190 = por %p188, %p189
      %p191 = scmp.ne.s32.totalorder %s177, %s178
      %p192 = scmp.eq.s32.totalorder %s25, 1
      %p193 = por %p191, %p192
      %p195 = scmp.ne.s32.totalorder %s178, %s194
      %p196 = scmp.eq.s32.totalorder %s25, 0
      %p197 = por %p195, %p196
      %p198 = scmp.le.s32.totalorder 1, %s19
      %p199 = scmp.lt.s32.totalorder %s19, 3
      %p200 = pnand %p198, %p199
      %p201 = pneg %p200
      // Predicated region
      $region9: #{tpu_custom_call.1} parent=5 // pred_check
        _
      $region10: #{tpu_custom_call.1} parent=5 // pred_check_branch
        %203 = sbr.rel (%p200) target = $region12
      $region11: #{tpu_custom_call.1} parent=5 // pred_region
        %s204 = ssub.s32 %s19, 1
        // Predicated region
        $region13: #{tpu_custom_call.1} parent=11 // pred_check
          %p205 = pneg %p80
        $region14: #{tpu_custom_call.1} parent=11 // pred_check_branch
          %207 = sbr.rel (%p205) target = $region16
        $region15: #{tpu_custom_call.1} parent=11 // pred_region
          _
        $region16: #{tpu_custom_call.1} parent=11 // pred_fallthru
          _
        // Predicated region
        $region17: #{tpu_custom_call.1} parent=11 // pred_check
          %p208 = pneg %p101
        $region18: #{tpu_custom_call.1} parent=11 // pred_check_branch
          %210 = sbr.rel (%p208) target = $region20
        $region19: #{tpu_custom_call.1} parent=11 // pred_region
          _
        $region20: #{tpu_custom_call.1} parent=11 // pred_fallthru
          _
        // Predicated region
        $region21: #{tpu_custom_call.1} parent=11 // pred_check
          %p211 = pneg %p122
        $region22: #{tpu_custom_call.1} parent=11 // pred_check_branch
          %213 = sbr.rel (%p211) target = $region24
        $region23: #{tpu_custom_call.1} parent=11 // pred_region
          %s215 = ssub.s32 640, 640
          %216 = vsyncadd [#allocation9], %s215
          %s217 = sshll.u32 [#allocation8], 4
          %s218 = int_to_ptr.vmem [resolvable:$true] %s217
          %223 = dma.hbm_to_vmem [thread:$0]  %s3, 640, %s218, [#allocation9], 128, 128, 8
        $region24: #{tpu_custom_call.1} parent=11 // pred_fallthru
          _
        // Predicated region
        $region25: #{tpu_custom_call.1} parent=11 // pred_check
          %p224 = pneg %p143
        $region26: #{tpu_custom_call.1} parent=11 // pred_check_branch
          %226 = sbr.rel (%p224) target = $region28
        $region27: #{tpu_custom_call.1} parent=11 // pred_region
          %s228 = ssub.s32 4096, 4096
          %229 = vsyncadd [#allocation9], %s228
          %s230 = sshll.u32 [#allocation10], 4
          %s231 = int_to_ptr.vmem [resolvable:$true] %s230
          %236 = dma.hbm_to_vmem [thread:$0]  %s4, 4096, %s231, [#allocation9], 512, 512, 32
        $region28: #{tpu_custom_call.1} parent=11 // pred_fallthru
          _
        // Predicated region
        $region29: #{tpu_custom_call.1} parent=11 // pred_check
          %p237 = pneg %p164
        $region30: #{tpu_custom_call.1} parent=11 // pred_check_branch
          %239 = sbr.rel (%p237) target = $region32
        $region31: #{tpu_custom_call.1} parent=11 // pred_region
          _
        $region32: #{tpu_custom_call.1} parent=11 // pred_fallthru
          _
      $region12: #{tpu_custom_call.1} parent=5 // pred_fallthru
        _
      %p240 = scmp.lt.s32.totalorder %s19, 2
      // Predicated region
      $region33: #{tpu_custom_call.1} parent=5 // pred_check
        %p241 = pneg %p240
      $region34: #{tpu_custom_call.1} parent=5 // pred_check_branch
        %243 = sbr.rel (%p241) target = $region36
      $region35: #{tpu_custom_call.1} parent=5 // pred_region
        // Predicated region
        $region37: #{tpu_custom_call.1} parent=35 // pred_check
          %p244 = pneg %p53
        $region38: #{tpu_custom_call.1} parent=35 // pred_check_branch
          %246 = sbr.rel (%p244) target = $region40
        $region39: #{tpu_custom_call.1} parent=35 // pred_region
          %s247 = sand.u32 %s43, 1
          %s248 = scalar_lea.sflag [#allocation6], %s247
          %s249 = sand.u32 %s43, 1
          %s250 = smul.addr %s249, 256
          %s251 = scalar_lea.vmem [#allocation5], %s250
          %s252 = smul.u32 2, %s27
          %s254 = ssub.s32 4096, 4096
          %255 = vsyncadd %s248, %s254
          %s256 = smul.addr %s26, 32
          %s257 = sadd.s32 %s252, %s256
          %s258 = smul.addr %s257, 128
          %s259 = scalar_lea.hbm %s0, %s258
          %s260 = sshll.u32 %s251, 4
          %s261 = int_to_ptr.vmem [resolvable:$true] %s260
          %266 = dma.hbm_to_vmem [thread:$0]  %s259, 4096, %s261, %s248, 128, 128, 8
        $region40: #{tpu_custom_call.1} parent=35 // pred_fallthru
          _
      $region36: #{tpu_custom_call.1} parent=5 // pred_fallthru
        _
      %p267 = scmp.le.s32.totalorder 1, %s19
      %p268 = scmp.lt.s32.totalorder %s19, 3
      %p269 = pnand %p267, %p268
      %p270 = pneg %p269
      // Predicated region
      $region41: #{tpu_custom_call.1} parent=5 // pred_check
        _
      $region42: #{tpu_custom_call.1} parent=5 // pred_check_branch
        %272 = sbr.rel (%p269) target = $region44
      $region43: #{tpu_custom_call.1} parent=5 // pred_region
        %s273 = ssub.s32 %s19, 1
        %s274 = sand.u32 %s46, 1
        %s275 = scalar_lea.sflag [#allocation6], %s274
        %s276 = sand.u32 %s46, 1
        %s277 = smul.addr %s276, 256
        %s278 = scalar_lea.vmem [#allocation5], %s277
        // Predicated region
        $region45: #{tpu_custom_call.1} parent=43 // pred_check
          %p279 = pneg %p59
        $region46: #{tpu_custom_call.1} parent=43 // pred_check_branch
          %281 = sbr.rel (%p279) target = $region48
        $region47: #{tpu_custom_call.1} parent=43 // pred_region
          %282 = dma.done %s275, 4096
        $region48: #{tpu_custom_call.1} parent=43 // pred_fallthru
          _
        // Predicated region
        $region49: #{tpu_custom_call.1} parent=43 // pred_check
          %p283 = pneg %p122
        $region50: #{tpu_custom_call.1} parent=43 // pred_check_branch
          %285 = sbr.rel (%p283) target = $region52
        $region51: #{tpu_custom_call.1} parent=43 // pred_region
          %286 = dma.done [#allocation9], 640
        $region52: #{tpu_custom_call.1} parent=43 // pred_fallthru
          _
        // Predicated region
        $region53: #{tpu_custom_call.1} parent=43 // pred_check
          %p287 = pneg %p143
        $region54: #{tpu_custom_call.1} parent=43 // pred_check_branch
          %289 = sbr.rel (%p287) target = $region56
        $region55: #{tpu_custom_call.1} parent=43 // pred_region
          %290 = dma.done [#allocation9], 4096
        $region56: #{tpu_custom_call.1} parent=43 // pred_fallthru
          _
        %s291 = sand.u32 %s46, 1
        %s292 = scalar_lea.sflag [#allocation6], %s291
        %s293 = sand.u32 %s46, 1
        %s294 = smul.addr %s293, 256
        %s295 = scalar_lea.vmem [#allocation5], %s294
        %p296 = pneg %p59
        %p297 = pneg %p56
        %p298 = pneg %p80
        %p299 = pneg %p77
        %p300 = pneg %p101
        %p301 = pneg %p98
        %p302 = pneg %p122
        %p303 = pneg %p119
        %p304 = pneg %p143
        %p305 = pneg %p140
        %p306 = pneg %p164
        %p307 = pneg %p161
        %p308 = pneg %p190
        %p309 = pneg %p187
        %s310 = sand.u32 %s177, 1
        %s311 = scalar_lea.sflag [#allocation7], %s310
        %s312 = sand.u32 %s177, 1
        %s313 = smul.addr %s312, 24
        %s314 = scalar_lea.vmem [#allocation11], %s313
        %s315 = smul.u32 2, %s29
        %p316 = scmp.eq.s32.totalorder %s29, 0
        // Predicated region
        $region57: #{tpu_custom_call.1} parent=43 // pred_check
          %p317 = pneg %p316
        $region58: #{tpu_custom_call.1} parent=43 // pred_check_branch
          %319 = sbr.rel (%p317) target = $region60
        $region59: #{tpu_custom_call.1} parent=43 // pred_region
          %vm320 = vcmask 122880
          %321 = vst.msk [vmem:[#allocation2] sm:$0x1] %vm320, 0.0
        $region60: #{tpu_custom_call.1} parent=43 // pred_fallthru
          _
        %v322 = vld [vmem:[%s278] sm:$0xff]
        %v323 = vld [vmem:[%s278 + $0x8] sm:$0xff]
        %v324 = vld [vmem:[%s278 + $0x10] sm:$0xff]
        %v325 = vld [vmem:[%s278 + $0x18] sm:$0xff]
        %v326 = vld [vmem:[%s278 + $0x20] sm:$0xff]
        %v327 = vld [vmem:[%s278 + $0x28] sm:$0xff]
        %v328 = vld [vmem:[%s278 + $0x30] sm:$0xff]
        %v329 = vld [vmem:[%s278 + $0x38] sm:$0xff]
        %v330 = vld [vmem:[%s278 + $0x40] sm:$0xff]
        %v331 = vld [vmem:[%s278 + $0x48] sm:$0xff]
        %v332 = vld [vmem:[%s278 + $0x50] sm:$0xff]
        %v333 = vld [vmem:[%s278 + $0x58] sm:$0xff]
        %v334 = vld [vmem:[%s278 + $0x60] sm:$0xff]
        %v335 = vld [vmem:[%s278 + $0x68] sm:$0xff]
        %v336 = vld [vmem:[%s278 + $0x70] sm:$0xff]
        %v337 = vld [vmem:[%s278 + $0x78] sm:$0xff]
        %v338 = vld [vmem:[%s278 + $0x80] sm:$0xff]
        %v339 = vld [vmem:[%s278 + $0x88] sm:$0xff]
        %v340 = vld [vmem:[%s278 + $0x90] sm:$0xff]
        %v341 = vld [vmem:[%s278 + $0x98] sm:$0xff]
        %v342 = vld [vmem:[%s278 + $0xa0] sm:$0xff]
        %v343 = vld [vmem:[%s278 + $0xa8] sm:$0xff]
        %v344 = vld [vmem:[%s278 + $0xb0] sm:$0xff]
        %v345 = vld [vmem:[%s278 + $0xb8] sm:$0xff]
        %v346 = vld [vmem:[%s278 + $0xc0] sm:$0xff]
        %v347 = vld [vmem:[%s278 + $0xc8] sm:$0xff]
        %v348 = vld [vmem:[%s278 + $0xd0] sm:$0xff]
        %v349 = vld [vmem:[%s278 + $0xd8] sm:$0xff]
        %v350 = vld [vmem:[%s278 + $0xe0] sm:$0xff]
        %v351 = vld [vmem:[%s278 + $0xe8] sm:$0xff]
        %v352 = vld [vmem:[%s278 + $0xf0] sm:$0xff]
        %v353 = vld [vmem:[%s278 + $0xf8] sm:$0xff]
        %vm354 = vcmask 130048
        %v355 = vsel %vm354, %v322, 0.0
        %356 = vadd.xlane.f32.xlu0 %v355
        %v357 = vpop.xlane.xlu0 %356
        %v358 = vsel %vm354, %v323, 0.0
        %359 = vadd.xlane.f32.xlu0 %v358
        %v360 = vpop.xlane.xlu0 %359
        %v361 = vsel %vm354, %v324, 0.0
        %362 = vadd.xlane.f32.xlu0 %v361
        %v363 = vpop.xlane.xlu0 %362
        %v364 = vsel %vm354, %v325, 0.0
        %365 = vadd.xlane.f32.xlu0 %v364
        %v366 = vpop.xlane.xlu0 %365
        %v367 = vsel %vm354, %v326, 0.0
        %368 = vadd.xlane.f32.xlu0 %v367
        %v369 = vpop.xlane.xlu0 %368
        %v370 = vsel %vm354, %v327, 0.0
        %371 = vadd.xlane.f32.xlu0 %v370
        %v372 = vpop.xlane.xlu0 %371
        %v373 = vsel %vm354, %v328, 0.0
        %374 = vadd.xlane.f32.xlu0 %v373
        %v375 = vpop.xlane.xlu0 %374
        %v376 = vsel %vm354, %v329, 0.0
        %377 = vadd.xlane.f32.xlu0 %v376
        %v378 = vpop.xlane.xlu0 %377
        %v379 = vsel %vm354, %v330, 0.0
        %380 = vadd.xlane.f32.xlu0 %v379
        %v381 = vpop.xlane.xlu0 %380
        %v382 = vsel %vm354, %v331, 0.0
        %383 = vadd.xlane.f32.xlu0 %v382
        %v384 = vpop.xlane.xlu0 %383
        %v385 = vsel %vm354, %v332, 0.0
        %386 = vadd.xlane.f32.xlu0 %v385
        %v387 = vpop.xlane.xlu0 %386
        %v388 = vsel %vm354, %v333, 0.0
        %389 = vadd.xlane.f32.xlu0 %v388
        %v390 = vpop.xlane.xlu0 %389
        %v391 = vsel %vm354, %v334, 0.0
        %392 = vadd.xlane.f32.xlu0 %v391
        %v393 = vpop.xlane.xlu0 %392
        %v394 = vsel %vm354, %v335, 0.0
        %395 = vadd.xlane.f32.xlu0 %v394
        %v396 = vpop.xlane.xlu0 %395
        %v397 = vsel %vm354, %v336, 0.0
        %398 = vadd.xlane.f32.xlu0 %v397
        %v399 = vpop.xlane.xlu0 %398
        %v400 = vsel %vm354, %v337, 0.0
        %401 = vadd.xlane.f32.xlu0 %v400
        %v402 = vpop.xlane.xlu0 %401
        %v403 = vsel %vm354, %v338, 0.0
        %404 = vadd.xlane.f32.xlu0 %v403
        %v405 = vpop.xlane.xlu0 %404
        %v406 = vsel %vm354, %v339, 0.0
        %407 = vadd.xlane.f32.xlu0 %v406
        %v408 = vpop.xlane.xlu0 %407
        %v409 = vsel %vm354, %v340, 0.0
        %410 = vadd.xlane.f32.xlu0 %v409
        %v411 = vpop.xlane.xlu0 %410
        %v412 = vsel %vm354, %v341, 0.0
        %413 = vadd.xlane.f32.xlu0 %v412
        %v414 = vpop.xlane.xlu0 %413
        %v415 = vsel %vm354, %v342, 0.0
        %416 = vadd.xlane.f32.xlu0 %v415
        %v417 = vpop.xlane.xlu0 %416
        %v418 = vsel %vm354, %v343, 0.0
        %419 = vadd.xlane.f32.xlu0 %v418
        %v420 = vpop.xlane.xlu0 %419
        %v421 = vsel %vm354, %v344, 0.0
        %422 = vadd.xlane.f32.xlu0 %v421
        %v423 = vpop.xlane.xlu0 %422
        %v424 = vsel %vm354, %v345, 0.0
        %425 = vadd.xlane.f32.xlu0 %v424
        %v426 = vpop.xlane.xlu0 %425
        %v427 = vsel %vm354, %v346, 0.0
        %428 = vadd.xlane.f32.xlu0 %v427
        %v429 = vpop.xlane.xlu0 %428
        %v430 = vsel %vm354, %v347, 0.0
        %431 = vadd.xlane.f32.xlu0 %v430
        %v432 = vpop.xlane.xlu0 %431
        %v433 = vsel %vm354, %v348, 0.0
        %434 = vadd.xlane.f32.xlu0 %v433
        %v435 = vpop.xlane.xlu0 %434
        %v436 = vsel %vm354, %v349, 0.0
        %437 = vadd.xlane.f32.xlu0 %v436
        %v438 = vpop.xlane.xlu0 %437
        %v439 = vsel %vm354, %v350, 0.0
        %440 = vadd.xlane.f32.xlu0 %v439
        %v441 = vpop.xlane.xlu0 %440
        %v442 = vsel %vm354, %v351, 0.0
        %443 = vadd.xlane.f32.xlu0 %v442
        %v444 = vpop.xlane.xlu0 %443
        %v445 = vsel %vm354, %v352, 0.0
        %446 = vadd.xlane.f32.xlu0 %v445
        %v447 = vpop.xlane.xlu0 %446
        %v448 = vsel %vm354, %v353, 0.0
        %449 = vadd.xlane.f32.xlu0 %v448
        %v450 = vpop.xlane.xlu0 %449
        %v451 = vld [vmem:[#allocation2] sm:$0x1]
        %v484 = vlaneseq
        %v485 = vand.u32 %v484, 127
        %v486 = vlaneseq
        %v487 = vshrl.u32 %v486, 7
        %v488 = vsub.s32 %v485, %v487
        %v489 = vrot.slane %v357, %v488
        %v490 = vadd.s32 %v485, 4294967288
        %v491 = vlaneseq
        %v492 = vshrl.u32 %v491, 7
        %v493 = vsub.s32 %v490, %v492
        %v494 = vrot.slane %v360, %v493
        %vm495 = vcmask 130112
        %v496 = vsel %vm495, %v494, %v489
        %v497 = vlaneseq
        %v498 = vshrl.u32 %v497, 7
        %v499 = vsub.s32 %v485, %v498
        %v500 = vrot.slane %v363, %v499
        %v501 = vlaneseq
        %v502 = vshrl.u32 %v501, 7
        %v503 = vsub.s32 %v490, %v502
        %v504 = vrot.slane %v366, %v503
        %v505 = vsel %vm495, %v504, %v500
        %v506 = vlaneseq
        %v507 = vshrl.u32 %v506, 7
        %v508 = vsub.s32 %v485, %v507
        %v509 = vrot.slane %v369, %v508
        %v510 = vlaneseq
        %v511 = vshrl.u32 %v510, 7
        %v512 = vsub.s32 %v490, %v511
        %v513 = vrot.slane %v372, %v512
        %v514 = vsel %vm495, %v513, %v509
        %v515 = vlaneseq
        %v516 = vshrl.u32 %v515, 7
        %v517 = vsub.s32 %v485, %v516
        %v518 = vrot.slane %v375, %v517
        %v519 = vlaneseq
        %v520 = vshrl.u32 %v519, 7
        %v521 = vsub.s32 %v490, %v520
        %v522 = vrot.slane %v378, %v521
        %v523 = vsel %vm495, %v522, %v518
        %v524 = vlaneseq
        %v525 = vshrl.u32 %v524, 7
        %v526 = vsub.s32 %v485, %v525
        %v527 = vrot.slane %v381, %v526
        %v528 = vlaneseq
        %v529 = vshrl.u32 %v528, 7
        %v530 = vsub.s32 %v490, %v529
        %v531 = vrot.slane %v384, %v530
        %v532 = vsel %vm495, %v531, %v527
        %v533 = vlaneseq
        %v534 = vshrl.u32 %v533, 7
        %v535 = vsub.s32 %v485, %v534
        %v536 = vrot.slane %v387, %v535
        %v537 = vlaneseq
        %v538 = vshrl.u32 %v537, 7
        %v539 = vsub.s32 %v490, %v538
        %v540 = vrot.slane %v390, %v539
        %v541 = vsel %vm495, %v540, %v536
        %v542 = vlaneseq
        %v543 = vshrl.u32 %v542, 7
        %v544 = vsub.s32 %v485, %v543
        %v545 = vrot.slane %v393, %v544
        %v546 = vlaneseq
        %v547 = vshrl.u32 %v546, 7
        %v548 = vsub.s32 %v490, %v547
        %v549 = vrot.slane %v396, %v548
        %v550 = vsel %vm495, %v549, %v545
        %v551 = vlaneseq
        %v552 = vshrl.u32 %v551, 7
        %v553 = vsub.s32 %v485, %v552
        %v554 = vrot.slane %v399, %v553
        %v555 = vlaneseq
        %v556 = vshrl.u32 %v555, 7
        %v557 = vsub.s32 %v490, %v556
        %v558 = vrot.slane %v402, %v557
        %v559 = vsel %vm495, %v558, %v554
        %v560 = vlaneseq
        %v561 = vshrl.u32 %v560, 7
        %v562 = vsub.s32 %v485, %v561
        %v563 = vrot.slane %v405, %v562
        %v564 = vlaneseq
        %v565 = vshrl.u32 %v564, 7
        %v566 = vsub.s32 %v490, %v565
        %v567 = vrot.slane %v408, %v566
        %v568 = vsel %vm495, %v567, %v563
        %v569 = vlaneseq
        %v570 = vshrl.u32 %v569, 7
        %v571 = vsub.s32 %v485, %v570
        %v572 = vrot.slane %v411, %v571
        %v573 = vlaneseq
        %v574 = vshrl.u32 %v573, 7
        %v575 = vsub.s32 %v490, %v574
        %v576 = vrot.slane %v414, %v575
        %v577 = vsel %vm495, %v576, %v572
        %v578 = vlaneseq
        %v579 = vshrl.u32 %v578, 7
        %v580 = vsub.s32 %v485, %v579
        %v581 = vrot.slane %v417, %v580
        %v582 = vlaneseq
        %v583 = vshrl.u32 %v582, 7
        %v584 = vsub.s32 %v490, %v583
        %v585 = vrot.slane %v420, %v584
        %v586 = vsel %vm495, %v585, %v581
        %v587 = vlaneseq
        %v588 = vshrl.u32 %v587, 7
        %v589 = vsub.s32 %v485, %v588
        %v590 = vrot.slane %v423, %v589
        %v591 = vlaneseq
        %v592 = vshrl.u32 %v591, 7
        %v593 = vsub.s32 %v490, %v592
        %v594 = vrot.slane %v426, %v593
        %v595 = vsel %vm495, %v594, %v590
        %v596 = vlaneseq
        %v597 = vshrl.u32 %v596, 7
        %v598 = vsub.s32 %v485, %v597
        %v599 = vrot.slane %v429, %v598
        %v600 = vlaneseq
        %v601 = vshrl.u32 %v600, 7
        %v602 = vsub.s32 %v490, %v601
        %v603 = vrot.slane %v432, %v602
        %v604 = vsel %vm495, %v603, %v599
        %v605 = vlaneseq
        %v606 = vshrl.u32 %v605, 7
        %v607 = vsub.s32 %v485, %v606
        %v608 = vrot.slane %v435, %v607
        %v609 = vlaneseq
        %v610 = vshrl.u32 %v609, 7
        %v611 = vsub.s32 %v490, %v610
        %v612 = vrot.slane %v438, %v611
        %v613 = vsel %vm495, %v612, %v608
        %v614 = vlaneseq
        %v615 = vshrl.u32 %v614, 7
        %v616 = vsub.s32 %v485, %v615
        %v617 = vrot.slane %v441, %v616
        %v618 = vlaneseq
        %v619 = vshrl.u32 %v618, 7
        %v620 = vsub.s32 %v490, %v619
        %v621 = vrot.slane %v444, %v620
        %v622 = vsel %vm495, %v621, %v617
        %v623 = vlaneseq
        %v624 = vshrl.u32 %v623, 7
        %v625 = vsub.s32 %v485, %v624
        %v626 = vrot.slane %v447, %v625
        %v627 = vlaneseq
        %v628 = vshrl.u32 %v627, 7
        %v629 = vsub.s32 %v490, %v628
        %v630 = vrot.slane %v450, %v629
        %v631 = vsel %vm495, %v630, %v626
        %vm632 = vcmask 1041409
        %v633 = vsel %vm632, %v505, %v496
        %vm634 = vcmask 1042434
        %v635 = vsel %vm634, %v514, %v633
        %vm636 = vcmask 1043459
        %v637 = vsel %vm636, %v523, %v635
        %vm638 = vcmask 1044484
        %v639 = vsel %vm638, %v532, %v637
        %vm640 = vcmask 1045509
        %v641 = vsel %vm640, %v541, %v639
        %vm642 = vcmask 1046534
        %v643 = vsel %vm642, %v550, %v641
        %vm644 = vcmask 1047559
        %v645 = vsel %vm644, %v559, %v643
        %v646 = vsel %vm632, %v577, %v568
        %v647 = vsel %vm634, %v586, %v646
        %v648 = vsel %vm636, %v595, %v647
        %v649 = vsel %vm638, %v604, %v648
        %v650 = vsel %vm640, %v613, %v649
        %v651 = vsel %vm642, %v622, %v650
        %v652 = vsel %vm644, %v631, %v651
        %v655 = vsel %vm354, %v645, 0.0
        %656 = vadd.xlane.f32.xlu0 %v655
        %v657 = vpop.xlane.xlu0 %656
        %v658 = vsel %vm354, %v652, 0.0
        %659 = vadd.xlane.f32.xlu0 %v658
        %v660 = vpop.xlane.xlu0 %659
        %v663 = vlaneseq
        %v664 = vshrl.u32 %v663, 7
        %v665 = vsub.s32 0, %v664
        %v666 = vrot.slane %v657, %v665
        %v667 = vlaneseq
        %v668 = vshrl.u32 %v667, 7
        %v669 = vsub.s32 1, %v668
        %v670 = vrot.slane %v657, %v669
        %v671 = vlaneseq
        %v672 = vshrl.u32 %v671, 7
        %v673 = vsub.s32 2, %v672
        %v674 = vrot.slane %v657, %v673
        %v675 = vlaneseq
        %v676 = vshrl.u32 %v675, 7
        %v677 = vsub.s32 3, %v676
        %v678 = vrot.slane %v657, %v677
        %v679 = vlaneseq
        %v680 = vshrl.u32 %v679, 7
        %v681 = vsub.s32 4, %v680
        %v682 = vrot.slane %v657, %v681
        %v683 = vlaneseq
        %v684 = vshrl.u32 %v683, 7
        %v685 = vsub.s32 5, %v684
        %v686 = vrot.slane %v657, %v685
        %v687 = vlaneseq
        %v688 = vshrl.u32 %v687, 7
        %v689 = vsub.s32 6, %v688
        %v690 = vrot.slane %v657, %v689
        %v691 = vlaneseq
        %v692 = vshrl.u32 %v691, 7
        %v693 = vsub.s32 7, %v692
        %v694 = vrot.slane %v657, %v693
        %v695 = vlaneseq
        %v696 = vshrl.u32 %v695, 7
        %v697 = vsub.s32 0, %v696
        %v698 = vrot.slane %v660, %v697
        %v699 = vlaneseq
        %v700 = vshrl.u32 %v699, 7
        %v701 = vsub.s32 1, %v700
        %v702 = vrot.slane %v660, %v701
        %v703 = vlaneseq
        %v704 = vshrl.u32 %v703, 7
        %v705 = vsub.s32 2, %v704
        %v706 = vrot.slane %v660, %v705
        %v707 = vlaneseq
        %v708 = vshrl.u32 %v707, 7
        %v709 = vsub.s32 3, %v708
        %v710 = vrot.slane %v660, %v709
        %v711 = vlaneseq
        %v712 = vshrl.u32 %v711, 7
        %v713 = vsub.s32 4, %v712
        %v714 = vrot.slane %v660, %v713
        %v715 = vlaneseq
        %v716 = vshrl.u32 %v715, 7
        %v717 = vsub.s32 5, %v716
        %v718 = vrot.slane %v660, %v717
        %v719 = vlaneseq
        %v720 = vshrl.u32 %v719, 7
        %v721 = vsub.s32 6, %v720
        %v722 = vrot.slane %v660, %v721
        %v723 = vlaneseq
        %v724 = vshrl.u32 %v723, 7
        %v725 = vsub.s32 7, %v724
        %v726 = vrot.slane %v660, %v725
        %v727 = vcombine.low %v666, %v670
        %v728 = vcombine.low %v674, %v678
        %v729 = vcombine.low %v682, %v686
        %v730 = vcombine.low %v690, %v694
        %v732 = vunpack.c.l.s4 1966171168
        %v733 = vunpack.c.0.s8 %v732
        %v734 = vlaneseq
        %v735 = vshrl.u32 %v734, 7
        %v736 = vsub.s32 %v733, %v735
        %v737 = vrot.slane %v727, %v736
        %v739 = vunpack.c.l.s4 1966171168
        %v740 = vunpack.c.0.s8 %v739
        %v741 = vlaneseq
        %v742 = vshrl.u32 %v741, 7
        %v743 = vsub.s32 %v740, %v742
        %v744 = vrot.slane %v728, %v743
        %v746 = vunpack.c.l.s4 1966171168
        %v747 = vunpack.c.0.s8 %v746
        %v748 = vlaneseq
        %v749 = vshrl.u32 %v748, 7
        %v750 = vsub.s32 %v747, %v749
        %v751 = vrot.slane %v729, %v750
        %v753 = vunpack.c.l.s4 1966171168
        %v754 = vunpack.c.0.s8 %v753
        %v755 = vlaneseq
        %v756 = vshrl.u32 %v755, 7
        %v757 = vsub.s32 %v754, %v756
        %v758 = vrot.slane %v730, %v757
        %v759 = vcombine.low %v737, %v744
        %v760 = vcombine.low %v751, %v758
        %v762 = vunpack.c.l.s4 1966171168
        %v763 = vunpack.c.0.s8 %v762
        %v764 = vlaneseq
        %v765 = vshrl.u32 %v764, 7
        %v766 = vsub.s32 %v763, %v765
        %v767 = vrot.slane %v759, %v766
        %v769 = vunpack.c.l.s4 1966171168
        %v770 = vunpack.c.0.s8 %v769
        %v771 = vlaneseq
        %v772 = vshrl.u32 %v771, 7
        %v773 = vsub.s32 %v770, %v772
        %v774 = vrot.slane %v760, %v773
        %v775 = vcombine.low %v767, %v774
        %v776 = vcombine.low %v698, %v702
        %v777 = vcombine.low %v706, %v710
        %v778 = vcombine.low %v714, %v718
        %v779 = vcombine.low %v722, %v726
        %v781 = vunpack.c.l.s4 1966171168
        %v782 = vunpack.c.0.s8 %v781
        %v783 = vlaneseq
        %v784 = vshrl.u32 %v783, 7
        %v785 = vsub.s32 %v782, %v784
        %v786 = vrot.slane %v776, %v785
        %v788 = vunpack.c.l.s4 1966171168
        %v789 = vunpack.c.0.s8 %v788
        %v790 = vlaneseq
        %v791 = vshrl.u32 %v790, 7
        %v792 = vsub.s32 %v789, %v791
        %v793 = vrot.slane %v777, %v792
        %v795 = vunpack.c.l.s4 1966171168
        %v796 = vunpack.c.0.s8 %v795
        %v797 = vlaneseq
        %v798 = vshrl.u32 %v797, 7
        %v799 = vsub.s32 %v796, %v798
        %v800 = vrot.slane %v778, %v799
        %v802 = vunpack.c.l.s4 1966171168
        %v803 = vunpack.c.0.s8 %v802
        %v804 = vlaneseq
        %v805 = vshrl.u32 %v804, 7
        %v806 = vsub.s32 %v803, %v805
        %v807 = vrot.slane %v779, %v806
        %v808 = vcombine.low %v786, %v793
        %v809 = vcombine.low %v800, %v807
        %v811 = vunpack.c.l.s4 1966171168
        %v812 = vunpack.c.0.s8 %v811
        %v813 = vlaneseq
        %v814 = vshrl.u32 %v813, 7
        %v815 = vsub.s32 %v812, %v814
        %v816 = vrot.slane %v808, %v815
        %v818 = vunpack.c.l.s4 1966171168
        %v819 = vunpack.c.0.s8 %v818
        %v820 = vlaneseq
        %v821 = vshrl.u32 %v820, 7
        %v822 = vsub.s32 %v819, %v821
        %v823 = vrot.slane %v809, %v822
        %v824 = vcombine.low %v816, %v823
        %825 = vset.pattern.permute.xlu0 0
        %826 = vperm.xlu0 %825, %v775
        %v827 = vpop.permute.xlu0 %826
        %828 = vset.pattern.permute.xlu0 0
        %829 = vperm.xlu0 %828, %v824
        %v830 = vpop.permute.xlu0 %829
        %v831 = vlaneseq
        %v832 = vshrl.u32 %v831, 7
        %v833 = vsub.s32 %v485, %v832
        %v834 = vrot.slane %v827, %v833
        %v835 = vlaneseq
        %v836 = vshrl.u32 %v835, 7
        %v837 = vsub.s32 %v490, %v836
        %v838 = vrot.slane %v830, %v837
        %v839 = vsel %vm495, %v838, %v834
        %v841 = vunpack.c.l.s4 1966171168
        %v842 = vunpack.c.0.s8 %v841
        %v843 = vlaneseq
        %v844 = vshrl.u32 %v843, 7
        %v845 = vsub.s32 %v842, %v844
        %v846 = vrot.slane %v839, %v845
        %v848 = vunpack.c.l.s4 1966171168
        %v849 = vunpack.c.0.s8 %v848
        %v850 = vlaneseq
        %v851 = vshrl.u32 %v850, 7
        %v852 = vsub.s32 %v849, %v851
        %v853 = vrot.slane %v846, %v852
        %v855 = vadd.f32 %v451, %v853
        %vm856 = vcmask 122880
        %857 = vst.msk [vmem:[#allocation2] sm:$0x1] %vm856, %v855
        // Predicated region
        $region61: #{tpu_custom_call.1} parent=43 // pred_check
          %p858 = pneg %p316
        $region62: #{tpu_custom_call.1} parent=43 // pred_check_branch
          %860 = sbr.rel (%p858) target = $region64
        $region63: #{tpu_custom_call.1} parent=43 // pred_region
          %v861 = vld [vmem:[#allocation2] sm:$0x1]
          %v862 = vmul.f32 %v861, 0.00390625
          %v863 = vld [vmem:[%s1] sm:$0xff]
          %v864 = vld [vmem:[%s1 + $0x8] sm:$0xff]
          %v865 = vld [vmem:[%s2] sm:$0x1]
          %v867 = vsel %vm354, %v862, 0
          %869 = vmatprep.subr.mxu0 0.0
          %870 = vmatpush1.msra.mxu0 %v863
          %871 = vmatprep.subr.mxu0 0.0
          %872 = vmatpush1.msra.mxu0 %v864
          %873 = vmatprep.subr.mxu0 0.0
          %874 = vmatpush1.msra.mxu0 0.0
          %875 = vmatprep.subr.mxu0 0.0
          %876 = vmatpush1.msra.mxu0 0.0
          %877 = vmatprep.subr.mxu0 0.0
          %878 = vmatpush1.msra.mxu0 0.0
          %879 = vmatprep.subr.mxu0 0.0
          %880 = vmatpush1.msra.mxu0 0.0
          %881 = vmatprep.subr.mxu0 0.0
          %882 = vmatpush1.msra.mxu0 0.0
          %883 = vmatprep.subr.mxu0 0.0
          %884 = vmatpush1.msra.mxu0 0.0
          %885 = vmatprep.subr.mxu0 0.0
          %886 = vmatpush1.msra.mxu0 0.0
          %887 = vmatprep.subr.mxu0 0.0
          %888 = vmatpush1.msra.mxu0 0.0
          %889 = vmatprep.subr.mxu0 0.0
          %890 = vmatpush1.msra.mxu0 0.0
          %891 = vmatprep.subr.mxu0 0.0
          %892 = vmatpush1.msra.mxu0 0.0
          %893 = vmatprep.subr.mxu0 0.0
          %894 = vmatpush1.msra.mxu0 0.0
          %895 = vmatprep.subr.mxu0 0.0
          %896 = vmatpush1.msra.mxu0 0.0
          %897 = vmatprep.subr.mxu0 0.0
          %898 = vmatpush1.msra.mxu0 0.0
          %899 = vmatprep.subr.mxu0 0.0
          %900 = vmatpush1.msra.mxu0 0.0
          %901 = vmatprep.subr.mxu0 0.0
          %902 = vmatpush1.msra.mxu0 0.0
          %903 = vmatprep.subr.mxu0 0.0
          %904 = vmatpush1.msra.mxu0 0.0
          %905 = vmatprep.subr.mxu0 0.0
          %906 = vmatpush1.msra.mxu0 0.0
          %907 = vmatprep.subr.mxu0 0.0
          %908 = vmatpush1.msra.mxu0 0.0
          %909 = vmatprep.subr.mxu0 0.0
          %910 = vmatpush1.msra.mxu0 0.0
          %911 = vmatprep.subr.mxu0 0.0
          %912 = vmatpush1.msra.mxu0 0.0
          %913 = vmatprep.subr.mxu0 0.0
          %914 = vmatpush1.msra.mxu0 0.0
          %915 = vmatprep.subr.mxu0 0.0
          %916 = vmatpush1.msra.mxu0 0.0
          %917 = vmatprep.subr.mxu0 0.0
          %918 = vmatpush1.msra.mxu0 0.0
          %919 = vmatprep.subr.mxu0 0.0
          %920 = vmatpush1.msra.mxu0 0.0
          %921 = vmatprep.subr.mxu0 0.0
          %922 = vmatpush1.msra.mxu0 0.0
          %923 = vmatprep.subr.mxu0 0.0
          %924 = vmatpush1.msra.mxu0 0.0
          %925 = vmatprep.subr.mxu0 0.0
          %926 = vmatpush1.msra.mxu0 0.0
          %927 = vmatprep.subr.mxu0 0.0
          %928 = vmatpush1.msra.mxu0 0.0
          %929 = vmatprep.subr.mxu0 0.0
          %930 = vmatpush1.msra.mxu0 0.0
          %931 = vmatprep.subr.mxu0 0.0
          %932 = vmatpush1.msra.mxu0 0.0
          %933 = vmatprep.mubr.f32.mxu0 0.0
          %934 = vmatmul.mubr.f32.gmra.mrb[0].mxu0 %v867
          %v935 = vpop.f32.mrb[0].mxu0
          %v936 = vadd.f32 %v865, %v935
          %v937 = vpop.f32.mrb[0].mxu0
          %938 = vdwg.mxu0
          %vm939 = vcmask 32768
          %v940 = vsel %vm939, %v936, -inf
          %941 = vmax.xlane.f32.xlu0 %v940
          %v942 = vpop.xlane.xlu0 %941
          %v943 = vsub.f32 %v936, %v942
          %v944 = vmul.f32 %v943, 1.442695
          %v945 = vpow.pop %v944
          %v946 = vsel %vm939, %v945, 0.0
          %947 = vadd.xlane.f32.xlu0 %v946
          %v948 = vpop.xlane.xlu0 %947
          %v949 = vrcp.pop %v948
          %v950 = vmul.f32 %v945, %v949
          %v951 = vld [vmem:[#allocation8] sm:$0xff]
          %s953 = vtos %v950
          %v954 = vstv %s953
          %v956 = vmul.f32 %v951, %v954
          %s957 = scalar_lea.vmem [#allocation8], 8
          %v958 = vld [vmem:[%s957] sm:$0xff]
          %959 = vrot.lane.b32.xlu0 %v950, 127
          %v960 = vpop.permute.xlu0 %959
          %s961 = vtos %v960
          %v962 = vstv %s961
          %v964 = vmul.f32 %v958, %v962
          %v965 = vadd.f32 %v956, %v964
          %s966 = scalar_lea.vmem [#allocation8], 16
          %v967 = vld [vmem:[%s966] sm:$0xff]
          %968 = vrot.lane.b32.xlu0 %v950, 126
          %v969 = vpop.permute.xlu0 %968
          %s970 = vtos %v969
          %v971 = vstv %s970
          %v973 = vmul.f32 %v967, %v971
          %v974 = vadd.f32 %v965, %v973
          %s975 = scalar_lea.vmem [#allocation8], 24
          %v976 = vld [vmem:[%s975] sm:$0xff]
          %977 = vrot.lane.b32.xlu0 %v950, 125
          %v978 = vpop.permute.xlu0 %977
          %s979 = vtos %v978
          %v980 = vstv %s979
          %v982 = vmul.f32 %v976, %v980
          %v983 = vadd.f32 %v974, %v982
          %s984 = scalar_lea.vmem [#allocation8], 32
          %v985 = vld [vmem:[%s984] sm:$0xff]
          %986 = vrot.lane.b32.xlu0 %v950, 124
          %v987 = vpop.permute.xlu0 %986
          %s988 = vtos %v987
          %v989 = vstv %s988
          %v991 = vmul.f32 %v985, %v989
          %v992 = vadd.f32 %v983, %v991
          %v993 = vld [vmem:[#allocation10] sm:$0xff]
          %v994 = vld [vmem:[#allocation10 + $0x8] sm:$0xff]
          %v995 = vld [vmem:[#allocation10 + $0x10] sm:$0xff]
          %v996 = vld [vmem:[#allocation10 + $0x18] sm:$0xff]
          %v997 = vld [vmem:[#allocation10 + $0x20] sm:$0xff]
          %v998 = vld [vmem:[#allocation10 + $0x28] sm:$0xff]
          %v999 = vld [vmem:[#allocation10 + $0x30] sm:$0xff]
          %v1000 = vld [vmem:[#allocation10 + $0x38] sm:$0xff]
          %v1001 = vld [vmem:[#allocation10 + $0x40] sm:$0xff]
          %v1002 = vld [vmem:[#allocation10 + $0x48] sm:$0xff]
          %v1003 = vld [vmem:[#allocation10 + $0x50] sm:$0xff]
          %v1004 = vld [vmem:[#allocation10 + $0x58] sm:$0xff]
          %v1005 = vld [vmem:[#allocation10 + $0x60] sm:$0xff]
          %v1006 = vld [vmem:[#allocation10 + $0x68] sm:$0xff]
          %v1007 = vld [vmem:[#allocation10 + $0x70] sm:$0xff]
          %v1008 = vld [vmem:[#allocation10 + $0x78] sm:$0xff]
          %v1009 = vld [vmem:[#allocation10 + $0x80] sm:$0xff]
          %v1010 = vld [vmem:[#allocation10 + $0x88] sm:$0xff]
          %v1011 = vld [vmem:[#allocation10 + $0x90] sm:$0xff]
          %v1012 = vld [vmem:[#allocation10 + $0x98] sm:$0xff]
          %v1013 = vld [vmem:[#allocation10 + $0xa0] sm:$0xff]
          %v1014 = vld [vmem:[#allocation10 + $0xa8] sm:$0xff]
          %v1015 = vld [vmem:[#allocation10 + $0xb0] sm:$0xff]
          %v1016 = vld [vmem:[#allocation10 + $0xb8] sm:$0xff]
          %v1017 = vld [vmem:[#allocation10 + $0xc0] sm:$0xff]
          %v1018 = vld [vmem:[#allocation10 + $0xc8] sm:$0xff]
          %v1019 = vld [vmem:[#allocation10 + $0xd0] sm:$0xff]
          %v1020 = vld [vmem:[#allocation10 + $0xd8] sm:$0xff]
          %v1021 = vld [vmem:[#allocation10 + $0xe0] sm:$0xff]
          %v1022 = vld [vmem:[#allocation10 + $0xe8] sm:$0xff]
          %v1023 = vld [vmem:[#allocation10 + $0xf0] sm:$0xff]
          %v1024 = vld [vmem:[#allocation10 + $0xf8] sm:$0xff]
          %vm1025 = vcmask 523264
          %v1027 = vsel %vm1025, %v992, 0
          %1029 = vmatprep.subr.mxu0 %v994
          %1030 = vmatpush1.msra.mxu0 %v993
          %1031 = vmatprep.subr.mxu0 %v998
          %1032 = vmatpush1.msra.mxu0 %v997
          %1033 = vmatprep.subr.mxu0 %v1002
          %1034 = vmatpush1.msra.mxu0 %v1001
          %1035 = vmatprep.subr.mxu0 %v1006
          %1036 = vmatpush1.msra.mxu0 %v1005
          %1037 = vmatprep.subr.mxu0 %v1010
          %1038 = vmatpush1.msra.mxu0 %v1009
          %1039 = vmatprep.subr.mxu0 %v1014
          %1040 = vmatpush1.msra.mxu0 %v1013
          %1041 = vmatprep.subr.mxu0 %v1018
          %1042 = vmatpush1.msra.mxu0 %v1017
          %1043 = vmatprep.subr.mxu0 %v1022
          %1044 = vmatpush1.msra.mxu0 %v1021
          %1045 = vmatprep.subr.mxu0 0.0
          %1046 = vmatpush1.msra.mxu0 0.0
          %1047 = vmatprep.subr.mxu0 0.0
          %1048 = vmatpush1.msra.mxu0 0.0
          %1049 = vmatprep.subr.mxu0 0.0
          %1050 = vmatpush1.msra.mxu0 0.0
          %1051 = vmatprep.subr.mxu0 0.0
          %1052 = vmatpush1.msra.mxu0 0.0
          %1053 = vmatprep.subr.mxu0 0.0
          %1054 = vmatpush1.msra.mxu0 0.0
          %1055 = vmatprep.subr.mxu0 0.0
          %1056 = vmatpush1.msra.mxu0 0.0
          %1057 = vmatprep.subr.mxu0 0.0
          %1058 = vmatpush1.msra.mxu0 0.0
          %1059 = vmatprep.subr.mxu0 0.0
          %1060 = vmatpush1.msra.mxu0 0.0
          %1061 = vmatprep.subr.mxu0 0.0
          %1062 = vmatpush1.msra.mxu0 0.0
          %1063 = vmatprep.subr.mxu0 0.0
          %1064 = vmatpush1.msra.mxu0 0.0
          %1065 = vmatprep.subr.mxu0 0.0
          %1066 = vmatpush1.msra.mxu0 0.0
          %1067 = vmatprep.subr.mxu0 0.0
          %1068 = vmatpush1.msra.mxu0 0.0
          %1069 = vmatprep.subr.mxu0 0.0
          %1070 = vmatpush1.msra.mxu0 0.0
          %1071 = vmatprep.subr.mxu0 0.0
          %1072 = vmatpush1.msra.mxu0 0.0
          %1073 = vmatprep.subr.mxu0 0.0
          %1074 = vmatpush1.msra.mxu0 0.0
          %1075 = vmatprep.subr.mxu0 0.0
          %1076 = vmatpush1.msra.mxu0 0.0
          %1077 = vmatprep.subr.mxu0 0.0
          %1078 = vmatpush1.msra.mxu0 0.0
          %1079 = vmatprep.subr.mxu0 0.0
          %1080 = vmatpush1.msra.mxu0 0.0
          %1081 = vmatprep.subr.mxu0 0.0
          %1082 = vmatpush1.msra.mxu0 0.0
          %1083 = vmatprep.subr.mxu0 0.0
          %1084 = vmatpush1.msra.mxu0 0.0
          %1085 = vmatprep.subr.mxu0 0.0
          %1086 = vmatpush1.msra.mxu0 0.0
          %1087 = vmatprep.subr.mxu0 0.0
          %1088 = vmatpush1.msra.mxu0 0.0
          %1089 = vmatprep.subr.mxu0 0.0
          %1090 = vmatpush1.msra.mxu0 0.0
          %1091 = vmatprep.subr.mxu0 0.0
          %1092 = vmatpush1.msra.mxu0 0.0
          %1093 = vmatprep.mubr.f32.mxu0 0.0
          %1094 = vmatmul.mubr.f32.gmra.mrb[0].mxu0 %v1027
          %v1095 = vpop.f32.mrb[0].mxu0
          %v1096 = vadd.f32 0.0, %v1095
          %v1097 = vpop.f32.mrb[0].mxu0
          %v1098 = vadd.f32 0.0, %v1097
          %1099 = vdwg.mxu0
          %1100 = vmatprep.subr.mxu0 %v996
          %1101 = vmatpush1.msra.mxu0 %v995
          %1102 = vmatprep.subr.mxu0 %v1000
          %1103 = vmatpush1.msra.mxu0 %v999
          %1104 = vmatprep.subr.mxu0 %v1004
          %1105 = vmatpush1.msra.mxu0 %v1003
          %1106 = vmatprep.subr.mxu0 %v1008
          %1107 = vmatpush1.msra.mxu0 %v1007
          %1108 = vmatprep.subr.mxu0 %v1012
          %1109 = vmatpush1.msra.mxu0 %v1011
          %1110 = vmatprep.subr.mxu0 %v1016
          %1111 = vmatpush1.msra.mxu0 %v1015
          %1112 = vmatprep.subr.mxu0 %v1020
          %1113 = vmatpush1.msra.mxu0 %v1019
          %1114 = vmatprep.subr.mxu0 %v1024
          %1115 = vmatpush1.msra.mxu0 %v1023
          %1116 = vmatprep.subr.mxu0 0.0
          %1117 = vmatpush1.msra.mxu0 0.0
          %1118 = vmatprep.subr.mxu0 0.0
          %1119 = vmatpush1.msra.mxu0 0.0
          %1120 = vmatprep.subr.mxu0 0.0
          %1121 = vmatpush1.msra.mxu0 0.0
          %1122 = vmatprep.subr.mxu0 0.0
          %1123 = vmatpush1.msra.mxu0 0.0
          %1124 = vmatprep.subr.mxu0 0.0
          %1125 = vmatpush1.msra.mxu0 0.0
          %1126 = vmatprep.subr.mxu0 0.0
          %1127 = vmatpush1.msra.mxu0 0.0
          %1128 = vmatprep.subr.mxu0 0.0
          %1129 = vmatpush1.msra.mxu0 0.0
          %1130 = vmatprep.subr.mxu0 0.0
          %1131 = vmatpush1.msra.mxu0 0.0
          %1132 = vmatprep.subr.mxu0 0.0
          %1133 = vmatpush1.msra.mxu0 0.0
          %1134 = vmatprep.subr.mxu0 0.0
          %1135 = vmatpush1.msra.mxu0 0.0
          %1136 = vmatprep.subr.mxu0 0.0
          %1137 = vmatpush1.msra.mxu0 0.0
          %1138 = vmatprep.subr.mxu0 0.0
          %1139 = vmatpush1.msra.mxu0 0.0
          %1140 = vmatprep.subr.mxu0 0.0
          %1141 = vmatpush1.msra.mxu0 0.0
          %1142 = vmatprep.subr.mxu0 0.0
          %1143 = vmatpush1.msra.mxu0 0.0
          %1144 = vmatprep.subr.mxu0 0.0
          %1145 = vmatpush1.msra.mxu0 0.0
          %1146 = vmatprep.subr.mxu0 0.0
          %1147 = vmatpush1.msra.mxu0 0.0
          %1148 = vmatprep.subr.mxu0 0.0
          %1149 = vmatpush1.msra.mxu0 0.0
          %1150 = vmatprep.subr.mxu0 0.0
          %1151 = vmatpush1.msra.mxu0 0.0
          %1152 = vmatprep.subr.mxu0 0.0
          %1153 = vmatpush1.msra.mxu0 0.0
          %1154 = vmatprep.subr.mxu0 0.0
          %1155 = vmatpush1.msra.mxu0 0.0
          %1156 = vmatprep.subr.mxu0 0.0
          %1157 = vmatpush1.msra.mxu0 0.0
          %1158 = vmatprep.subr.mxu0 0.0
          %1159 = vmatpush1.msra.mxu0 0.0
          %1160 = vmatprep.subr.mxu0 0.0
          %1161 = vmatpush1.msra.mxu0 0.0
          %1162 = vmatprep.subr.mxu0 0.0
          %1163 = vmatpush1.msra.mxu0 0.0
          %1164 = vmatprep.mubr.f32.mxu0 0.0
          %1165 = vmatmul.mubr.f32.gmra.mrb[0].mxu0 %v1027
          %v1166 = vpop.f32.mrb[0].mxu0
          %v1167 = vadd.f32 0.0, %v1166
          %v1168 = vpop.f32.mrb[0].mxu0
          %v1169 = vadd.f32 0.0, %v1168
          %1170 = vdwg.mxu0
          %1171 = vst [vmem:[#allocation3] sm:$0xff] %v1096
          %1172 = vst [vmem:[#allocation3 + $0x8] sm:$0xff] %v1098
          %1173 = vst [vmem:[#allocation3 + $0x10] sm:$0xff] %v1167
          %vm1174 = vcmask 588800
          %1175 = vst.msk [vmem:[#allocation3 + $0x18] sm:$0xff] %vm1174, %v1169
          %v1176 = vld [vmem:[#allocation3] sm:$0xff]
          %v1177 = vld [vmem:[#allocation3 + $0x8] sm:$0xff]
          %v1178 = vld [vmem:[#allocation3 + $0x10] sm:$0xff]
          %1179 = vst [vmem:[#allocation4] sm:$0xff] %v1176
          %1180 = vst [vmem:[#allocation4 + $0x8] sm:$0xff] %v1177
          %1181 = vst [vmem:[#allocation4 + $0x10] sm:$0xff] %v1178
          %v1182 = vld [vmem:[#allocation3] sm:$0xff]
          %v1183 = vld [vmem:[#allocation3 + $0x8] sm:$0xff]
          %v1184 = vld [vmem:[#allocation3 + $0x10] sm:$0xff]
          %v1185 = vld [vmem:[#allocation3 + $0x18] sm:$0xff]
          %1190 = vrot.lane.b32.xlu0 %v1182, 127
          %v1191 = vpop.permute.xlu0 %1190
          %1192 = vrot.lane.b32.xlu0 %v1183, 127
          %v1193 = vpop.permute.xlu0 %1192
          %1194 = vrot.lane.b32.xlu0 %v1184, 127
          %v1195 = vpop.permute.xlu0 %1194
          %1196 = vrot.lane.b32.xlu0 %v1185, 127
          %v1197 = vpop.permute.xlu0 %1196
          %vm1198 = vcmask 1039360
          %v1199 = vsel %vm1198, %v1191, %v1193
          %v1200 = vsel %vm1198, %v1193, %v1195
          %v1201 = vsel %vm1198, %v1195, %v1197
          %1205 = vst [vmem:[#allocation4 + $0x18] sm:$0xff] %v1199
          %1206 = vst [vmem:[#allocation4 + $0x20] sm:$0xff] %v1200
          %1207 = vst [vmem:[#allocation4 + $0x28] sm:$0xff] %v1201
          %v1208 = vld [vmem:[#allocation3] sm:$0xff]
          %v1209 = vld [vmem:[#allocation3 + $0x8] sm:$0xff]
          %v1210 = vld [vmem:[#allocation3 + $0x10] sm:$0xff]
          %v1211 = vld [vmem:[#allocation3 + $0x18] sm:$0xff]
          %1216 = vrot.lane.b32.xlu0 %v1208, 126
          %v1217 = vpop.permute.xlu0 %1216
          %1218 = vrot.lane.b32.xlu0 %v1209, 126
          %v1219 = vpop.permute.xlu0 %1218
          %1220 = vrot.lane.b32.xlu0 %v1210, 126
          %v1221 = vpop.permute.xlu0 %1220
          %1222 = vrot.lane.b32.xlu0 %v1211, 126
          %v1223 = vpop.permute.xlu0 %1222
          %vm1224 = vcmask 1031168
          %v1225 = vsel %vm1224, %v1217, %v1219
          %v1226 = vsel %vm1224, %v1219, %v1221
          %v1227 = vsel %vm1224, %v1221, %v1223
          %1231 = vst [vmem:[#allocation4 + $0x30] sm:$0xff] %v1225
          %1232 = vst [vmem:[#allocation4 + $0x38] sm:$0xff] %v1226
          %1233 = vst [vmem:[#allocation4 + $0x40] sm:$0xff] %v1227
          %v1234 = vld [vmem:[#allocation3] sm:$0xff]
          %v1235 = vld [vmem:[#allocation3 + $0x8] sm:$0xff]
          %v1236 = vld [vmem:[#allocation3 + $0x10] sm:$0xff]
          %v1237 = vld [vmem:[#allocation3 + $0x18] sm:$0xff]
          %1242 = vrot.lane.b32.xlu0 %v1234, 104
          %v1243 = vpop.permute.xlu0 %1242
          %1244 = vrot.lane.b32.xlu0 %v1235, 104
          %v1245 = vpop.permute.xlu0 %1244
          %1246 = vrot.lane.b32.xlu0 %v1236, 104
          %v1247 = vpop.permute.xlu0 %1246
          %1248 = vrot.lane.b32.xlu0 %v1237, 104
          %v1249 = vpop.permute.xlu0 %1248
          %vm1250 = vcmask 850944
          %v1251 = vsel %vm1250, %v1243, %v1245
          %v1252 = vsel %vm1250, %v1245, %v1247
          %v1253 = vsel %vm1250, %v1247, %v1249
          %1257 = vst [vmem:[#allocation4 + $0x48] sm:$0xff] %v1251
          %1258 = vst [vmem:[#allocation4 + $0x50] sm:$0xff] %v1252
          %1259 = vst [vmem:[#allocation4 + $0x58] sm:$0xff] %v1253
          %v1260 = vld [vmem:[#allocation3] sm:$0xff]
          %v1261 = vld [vmem:[#allocation3 + $0x8] sm:$0xff]
          %v1262 = vld [vmem:[#allocation3 + $0x10] sm:$0xff]
          %v1263 = vld [vmem:[#allocation3 + $0x18] sm:$0xff]
          %1268 = vrot.lane.b32.xlu0 %v1260, 103
          %v1269 = vpop.permute.xlu0 %1268
          %1270 = vrot.lane.b32.xlu0 %v1261, 103
          %v1271 = vpop.permute.xlu0 %1270
          %1272 = vrot.lane.b32.xlu0 %v1262, 103
          %v1273 = vpop.permute.xlu0 %1272
          %1274 = vrot.lane.b32.xlu0 %v1263, 103
          %v1275 = vpop.permute.xlu0 %1274
          %vm1276 = vcmask 842752
          %v1277 = vsel %vm1276, %v1269, %v1271
          %v1278 = vsel %vm1276, %v1271, %v1273
          %v1279 = vsel %vm1276, %v1273, %v1275
          %1283 = vst [vmem:[#allocation4 + $0x60] sm:$0xff] %v1277
          %1284 = vst [vmem:[#allocation4 + $0x68] sm:$0xff] %v1278
          %1285 = vst [vmem:[#allocation4 + $0x70] sm:$0xff] %v1279
          %v1286 = vld [vmem:[#allocation3] sm:$0xff]
          %v1287 = vld [vmem:[#allocation3 + $0x8] sm:$0xff]
          %v1288 = vld [vmem:[#allocation3 + $0x10] sm:$0xff]
          %v1289 = vld [vmem:[#allocation3 + $0x18] sm:$0xff]
          %1294 = vrot.lane.b32.xlu0 %v1286, 102
          %v1295 = vpop.permute.xlu0 %1294
          %1296 = vrot.lane.b32.xlu0 %v1287, 102
          %v1297 = vpop.permute.xlu0 %1296
          %1298 = vrot.lane.b32.xlu0 %v1288, 102
          %v1299 = vpop.permute.xlu0 %1298
          %1300 = vrot.lane.b32.xlu0 %v1289, 102
          %v1301 = vpop.permute.xlu0 %1300
          %vm1302 = vcmask 834560
          %v1303 = vsel %vm1302, %v1295, %v1297
          %v1304 = vsel %vm1302, %v1297, %v1299
          %v1305 = vsel %vm1302, %v1299, %v1301
          %1309 = vst [vmem:[#allocation4 + $0x78] sm:$0xff] %v1303
          %1310 = vst [vmem:[#allocation4 + $0x80] sm:$0xff] %v1304
          %1311 = vst [vmem:[#allocation4 + $0x88] sm:$0xff] %v1305
          %v1312 = vld [vmem:[#allocation3] sm:$0xff]
          %v1313 = vld [vmem:[#allocation3 + $0x8] sm:$0xff]
          %v1314 = vld [vmem:[#allocation3 + $0x10] sm:$0xff]
          %v1315 = vld [vmem:[#allocation3 + $0x18] sm:$0xff]
          %1320 = vrot.lane.b32.xlu0 %v1312, 80
          %v1321 = vpop.permute.xlu0 %1320
          %1322 = vrot.lane.b32.xlu0 %v1313, 80
          %v1323 = vpop.permute.xlu0 %1322
          %1324 = vrot.lane.b32.xlu0 %v1314, 80
          %v1325 = vpop.permute.xlu0 %1324
          %1326 = vrot.lane.b32.xlu0 %v1315, 80
          %v1327 = vpop.permute.xlu0 %1326
          %vm1328 = vcmask 654336
          %v1329 = vsel %vm1328, %v1321, %v1323
          %v1330 = vsel %vm1328, %v1323, %v1325
          %v1331 = vsel %vm1328, %v1325, %v1327
          %1335 = vst [vmem:[#allocation4 + $0x90] sm:$0xff] %v1329
          %1336 = vst [vmem:[#allocation4 + $0x98] sm:$0xff] %v1330
          %1337 = vst [vmem:[#allocation4 + $0xa0] sm:$0xff] %v1331
          %v1338 = vld [vmem:[#allocation3] sm:$0xff]
          %v1339 = vld [vmem:[#allocation3 + $0x8] sm:$0xff]
          %v1340 = vld [vmem:[#allocation3 + $0x10] sm:$0xff]
          %v1341 = vld [vmem:[#allocation3 + $0x18] sm:$0xff]
          %1346 = vrot.lane.b32.xlu0 %v1338, 79
          %v1347 = vpop.permute.xlu0 %1346
          %1348 = vrot.lane.b32.xlu0 %v1339, 79
          %v1349 = vpop.permute.xlu0 %1348
          %1350 = vrot.lane.b32.xlu0 %v1340, 79
          %v1351 = vpop.permute.xlu0 %1350
          %1352 = vrot.lane.b32.xlu0 %v1341, 79
          %v1353 = vpop.permute.xlu0 %1352
          %vm1354 = vcmask 646144
          %v1355 = vsel %vm1354, %v1347, %v1349
          %v1356 = vsel %vm1354, %v1349, %v1351
          %v1357 = vsel %vm1354, %v1351, %v1353
          %1361 = vst [vmem:[#allocation4 + $0xa8] sm:$0xff] %v1355
          %1362 = vst [vmem:[#allocation4 + $0xb0] sm:$0xff] %v1356
          %1363 = vst [vmem:[#allocation4 + $0xb8] sm:$0xff] %v1357
          %v1364 = vld [vmem:[#allocation3] sm:$0xff]
          %v1365 = vld [vmem:[#allocation3 + $0x8] sm:$0xff]
          %v1366 = vld [vmem:[#allocation3 + $0x10] sm:$0xff]
          %v1367 = vld [vmem:[#allocation3 + $0x18] sm:$0xff]
          %1372 = vrot.lane.b32.xlu0 %v1364, 78
          %v1373 = vpop.permute.xlu0 %1372
          %1374 = vrot.lane.b32.xlu0 %v1365, 78
          %v1375 = vpop.permute.xlu0 %1374
          %1376 = vrot.lane.b32.xlu0 %v1366, 78
          %v1377 = vpop.permute.xlu0 %1376
          %1378 = vrot.lane.b32.xlu0 %v1367, 78
          %v1379 = vpop.permute.xlu0 %1378
          %vm1380 = vcmask 637952
          %v1381 = vsel %vm1380, %v1373, %v1375
          %v1382 = vsel %vm1380, %v1375, %v1377
          %v1383 = vsel %vm1380, %v1377, %v1379
          %1387 = vst [vmem:[#allocation4 + $0xc0] sm:$0xff] %v1381
          %1388 = vst [vmem:[#allocation4 + $0xc8] sm:$0xff] %v1382
          %1389 = vst [vmem:[#allocation4 + $0xd0] sm:$0xff] %v1383
          %v1390 = vld [vmem:[%s5] sm:$0xff]
          %v1391 = vld [vmem:[#allocation4] sm:$0xff]
          %v1392 = vld [vmem:[#allocation4 + $0x8] sm:$0xff]
          %v1393 = vld [vmem:[#allocation4 + $0x10] sm:$0xff]
          %v1394 = vld [vmem:[#allocation4 + $0x18] sm:$0xff]
          %v1395 = vld [vmem:[#allocation4 + $0x20] sm:$0xff]
          %v1396 = vld [vmem:[#allocation4 + $0x28] sm:$0xff]
          %v1397 = vld [vmem:[#allocation4 + $0x30] sm:$0xff]
          %v1398 = vld [vmem:[#allocation4 + $0x38] sm:$0xff]
          %v1399 = vld [vmem:[#allocation4 + $0x40] sm:$0xff]
          %v1400 = vld [vmem:[#allocation4 + $0x48] sm:$0xff]
          %v1401 = vld [vmem:[#allocation4 + $0x50] sm:$0xff]
          %v1402 = vld [vmem:[#allocation4 + $0x58] sm:$0xff]
          %v1403 = vld [vmem:[#allocation4 + $0x60] sm:$0xff]
          %v1404 = vld [vmem:[#allocation4 + $0x68] sm:$0xff]
          %v1405 = vld [vmem:[#allocation4 + $0x70] sm:$0xff]
          %v1406 = vld [vmem:[#allocation4 + $0x78] sm:$0xff]
          %v1407 = vld [vmem:[#allocation4 + $0x80] sm:$0xff]
          %v1408 = vld [vmem:[#allocation4 + $0x88] sm:$0xff]
          %v1409 = vld [vmem:[#allocation4 + $0x90] sm:$0xff]
          %v1410 = vld [vmem:[#allocation4 + $0x98] sm:$0xff]
          %v1411 = vld [vmem:[#allocation4 + $0xa0] sm:$0xff]
          %v1412 = vld [vmem:[#allocation4 + $0xa8] sm:$0xff]
          %v1413 = vld [vmem:[#allocation4 + $0xb0] sm:$0xff]
          %v1414 = vld [vmem:[#allocation4 + $0xb8] sm:$0xff]
          %v1415 = vld [vmem:[#allocation4 + $0xc0] sm:$0xff]
          %v1416 = vld [vmem:[#allocation4 + $0xc8] sm:$0xff]
          %v1417 = vld [vmem:[#allocation4 + $0xd0] sm:$0xff]
          %v1419 = vsel %vm1174, %v1390, 0
          %1421 = vmatprep.subr.mxu0 %v1392
          %1422 = vmatpush1.msra.mxu0 %v1391
          %1423 = vmatprep.subr.mxu0 %v1395
          %1424 = vmatpush1.msra.mxu0 %v1394
          %1425 = vmatprep.subr.mxu0 %v1398
          %1426 = vmatpush1.msra.mxu0 %v1397
          %1427 = vmatprep.subr.mxu0 %v1401
          %1428 = vmatpush1.msra.mxu0 %v1400
          %1429 = vmatprep.subr.mxu0 %v1404
          %1430 = vmatpush1.msra.mxu0 %v1403
          %1431 = vmatprep.subr.mxu0 %v1407
          %1432 = vmatpush1.msra.mxu0 %v1406
          %1433 = vmatprep.subr.mxu0 %v1410
          %1434 = vmatpush1.msra.mxu0 %v1409
          %1435 = vmatprep.subr.mxu0 %v1413
          %1436 = vmatpush1.msra.mxu0 %v1412
          %1437 = vmatprep.subr.mxu0 %v1416
          %1438 = vmatpush1.msra.mxu0 %v1415
          %1439 = vmatprep.subr.mxu0 0.0
          %1440 = vmatpush1.msra.mxu0 0.0
          %1441 = vmatprep.subr.mxu0 0.0
          %1442 = vmatpush1.msra.mxu0 0.0
          %1443 = vmatprep.subr.mxu0 0.0
          %1444 = vmatpush1.msra.mxu0 0.0
          %1445 = vmatprep.subr.mxu0 0.0
          %1446 = vmatpush1.msra.mxu0 0.0
          %1447 = vmatprep.subr.mxu0 0.0
          %1448 = vmatpush1.msra.mxu0 0.0
          %1449 = vmatprep.subr.mxu0 0.0
          %1450 = vmatpush1.msra.mxu0 0.0
          %1451 = vmatprep.subr.mxu0 0.0
          %1452 = vmatpush1.msra.mxu0 0.0
          %1453 = vmatprep.subr.mxu0 0.0
          %1454 = vmatpush1.msra.mxu0 0.0
          %1455 = vmatprep.subr.mxu0 0.0
          %1456 = vmatpush1.msra.mxu0 0.0
          %1457 = vmatprep.subr.mxu0 0.0
          %1458 = vmatpush1.msra.mxu0 0.0
          %1459 = vmatprep.subr.mxu0 0.0
          %1460 = vmatpush1.msra.mxu0 0.0
          %1461 = vmatprep.subr.mxu0 0.0
          %1462 = vmatpush1.msra.mxu0 0.0
          %1463 = vmatprep.subr.mxu0 0.0
          %1464 = vmatpush1.msra.mxu0 0.0
          %1465 = vmatprep.subr.mxu0 0.0
          %1466 = vmatpush1.msra.mxu0 0.0
          %1467 = vmatprep.subr.mxu0 0.0
          %1468 = vmatpush1.msra.mxu0 0.0
          %1469 = vmatprep.subr.mxu0 0.0
          %1470 = vmatpush1.msra.mxu0 0.0
          %1471 = vmatprep.subr.mxu0 0.0
          %1472 = vmatpush1.msra.mxu0 0.0
          %1473 = vmatprep.subr.mxu0 0.0
          %1474 = vmatpush1.msra.mxu0 0.0
          %1475 = vmatprep.subr.mxu0 0.0
          %1476 = vmatpush1.msra.mxu0 0.0
          %1477 = vmatprep.subr.mxu0 0.0
          %1478 = vmatpush1.msra.mxu0 0.0
          %1479 = vmatprep.subr.mxu0 0.0
          %1480 = vmatpush1.msra.mxu0 0.0
          %1481 = vmatprep.subr.mxu0 0.0
          %1482 = vmatpush1.msra.mxu0 0.0
          %1483 = vmatprep.subr.mxu0 0.0
          %1484 = vmatpush1.msra.mxu0 0.0
          %1485 = vmatprep.mubr.f32.mxu0 0.0
          %1486 = vmatmul.mubr.f32.gmra.mrb[0].mxu0 %v1419
          %v1487 = vpop.f32.mrb[0].mxu0
          %v1488 = vadd.f32 0.0, %v1487
          %v1489 = vpop.f32.mrb[0].mxu0
          %v1490 = vadd.f32 0.0, %v1489
          %1491 = vdwg.mxu0
          %1492 = vmatprep.subr.mxu0 0.0
          %1493 = vmatpush1.msra.mxu0 %v1393
          %1494 = vmatprep.subr.mxu0 0.0
          %1495 = vmatpush1.msra.mxu0 %v1396
          %1496 = vmatprep.subr.mxu0 0.0
          %1497 = vmatpush1.msra.mxu0 %v1399
          %1498 = vmatprep.subr.mxu0 0.0
          %1499 = vmatpush1.msra.mxu0 %v1402
          %1500 = vmatprep.subr.mxu0 0.0
          %1501 = vmatpush1.msra.mxu0 %v1405
          %1502 = vmatprep.subr.mxu0 0.0
          %1503 = vmatpush1.msra.mxu0 %v1408
          %1504 = vmatprep.subr.mxu0 0.0
          %1505 = vmatpush1.msra.mxu0 %v1411
          %1506 = vmatprep.subr.mxu0 0.0
          %1507 = vmatpush1.msra.mxu0 %v1414
          %1508 = vmatprep.subr.mxu0 0.0
          %1509 = vmatpush1.msra.mxu0 %v1417
          %1510 = vmatprep.subr.mxu0 0.0
          %1511 = vmatpush1.msra.mxu0 0.0
          %1512 = vmatprep.subr.mxu0 0.0
          %1513 = vmatpush1.msra.mxu0 0.0
          %1514 = vmatprep.subr.mxu0 0.0
          %1515 = vmatpush1.msra.mxu0 0.0
          %1516 = vmatprep.subr.mxu0 0.0
          %1517 = vmatpush1.msra.mxu0 0.0
          %1518 = vmatprep.subr.mxu0 0.0
          %1519 = vmatpush1.msra.mxu0 0.0
          %1520 = vmatprep.subr.mxu0 0.0
          %1521 = vmatpush1.msra.mxu0 0.0
          %1522 = vmatprep.subr.mxu0 0.0
          %1523 = vmatpush1.msra.mxu0 0.0
          %1524 = vmatprep.subr.mxu0 0.0
          %1525 = vmatpush1.msra.mxu0 0.0
          %1526 = vmatprep.subr.mxu0 0.0
          %1527 = vmatpush1.msra.mxu0 0.0
          %1528 = vmatprep.subr.mxu0 0.0
          %1529 = vmatpush1.msra.mxu0 0.0
          %1530 = vmatprep.subr.mxu0 0.0
          %1531 = vmatpush1.msra.mxu0 0.0
          %1532 = vmatprep.subr.mxu0 0.0
          %1533 = vmatpush1.msra.mxu0 0.0
          %1534 = vmatprep.subr.mxu0 0.0
          %1535 = vmatpush1.msra.mxu0 0.0
          %1536 = vmatprep.subr.mxu0 0.0
          %1537 = vmatpush1.msra.mxu0 0.0
          %1538 = vmatprep.subr.mxu0 0.0
          %1539 = vmatpush1.msra.mxu0 0.0
          %1540 = vmatprep.subr.mxu0 0.0
          %1541 = vmatpush1.msra.mxu0 0.0
          %1542 = vmatprep.subr.mxu0 0.0
          %1543 = vmatpush1.msra.mxu0 0.0
          %1544 = vmatprep.subr.mxu0 0.0
          %1545 = vmatpush1.msra.mxu0 0.0
          %1546 = vmatprep.subr.mxu0 0.0
          %1547 = vmatpush1.msra.mxu0 0.0
          %1548 = vmatprep.subr.mxu0 0.0
          %1549 = vmatpush1.msra.mxu0 0.0
          %1550 = vmatprep.subr.mxu0 0.0
          %1551 = vmatpush1.msra.mxu0 0.0
          %1552 = vmatprep.subr.mxu0 0.0
          %1553 = vmatpush1.msra.mxu0 0.0
          %1554 = vmatprep.subr.mxu0 0.0
          %1555 = vmatpush1.msra.mxu0 0.0
          %1556 = vmatprep.mubr.f32.mxu0 0.0
          %1557 = vmatmul.mubr.f32.gmra.mrb[0].mxu0 %v1419
          %v1558 = vpop.f32.mrb[0].mxu0
          %v1559 = vadd.f32 0.0, %v1558
          %v1560 = vpop.f32.mrb[0].mxu0
          %1561 = vdwg.mxu0
          %1562 = vst [vmem:[%s314] sm:$0xff] %v1488
          %1563 = vst [vmem:[%s314 + $0x8] sm:$0xff] %v1490
          %1564 = vst [vmem:[%s314 + $0x10] sm:$0xff] %v1559
        $region64: #{tpu_custom_call.1} parent=43 // pred_fallthru
          _
        %s1565 = sand.u32 %s177, 1
        %s1566 = scalar_lea.sflag [#allocation7], %s1565
        %s1567 = sand.u32 %s177, 1
        %s1568 = smul.addr %s1567, 24
        %s1569 = scalar_lea.vmem [#allocation11], %s1568
        // Predicated region
        $region65: #{tpu_custom_call.1} parent=43 // pred_check
          %p1570 = pneg %p187
        $region66: #{tpu_custom_call.1} parent=43 // pred_check_branch
          %1572 = sbr.rel (%p1570) target = $region68
        $region67: #{tpu_custom_call.1} parent=43 // pred_region
          %s1574 = ssub.s32 384, 384
          %1575 = vsyncadd %s1566, %s1574
          %s1576 = smul.addr %s28, 3
          %s1577 = smul.addr %s1576, 128
          %s1578 = scalar_lea.hbm %s6, %s1577
          %s1580 = sshll.u32 %s1569, 4
          %s1581 = int_to_ptr.vmem [resolvable:$true] %s1580
          %1583 = dma.vmem_to_hbm [thread:$0]  %s1581, 384, %s1578, %s1566
        $region68: #{tpu_custom_call.1} parent=43 // pred_fallthru
          _
      $region44: #{tpu_custom_call.1} parent=5 // pred_fallthru
        _
      %p1584 = scmp.le.s32.totalorder 2, %s19
      // Predicated region
      $region69: #{tpu_custom_call.1} parent=5 // pred_check
        %p1585 = pneg %p1584
      $region70: #{tpu_custom_call.1} parent=5 // pred_check_branch
        %1587 = sbr.rel (%p1585) target = $region72
      $region71: #{tpu_custom_call.1} parent=5 // pred_region
        %s1588 = ssub.s32 %s19, 2
        // Predicated region
        $region73: #{tpu_custom_call.1} parent=71 // pred_check
          %p1589 = pneg %p193
        $region74: #{tpu_custom_call.1} parent=71 // pred_check_branch
          %1591 = sbr.rel (%p1589) target = $region76
        $region75: #{tpu_custom_call.1} parent=71 // pred_region
          %s1592 = sand.u32 %s178, 1
          %s1593 = scalar_lea.sflag [#allocation7], %s1592
          %s1594 = sand.u32 %s178, 1
          %s1595 = smul.addr %s1594, 24
          %s1596 = scalar_lea.vmem [#allocation11], %s1595
          %1597 = dma.done %s1593, 384
        $region76: #{tpu_custom_call.1} parent=71 // pred_fallthru
          _
      $region72: #{tpu_custom_call.1} parent=5 // pred_fallthru
        _
    $region6: #{tpu_custom_call.1} parent=1 // loop_footer
      %s23 = sadd.s32 1, %s19
    $region7: #{tpu_custom_call.1} parent=1 // loop_footer_branch
      %18 = sbr.rel target = $region3
    $region8: #{tpu_custom_call.1} parent=1 // loop_exit
      _
    %1598 = vsyncpa [#allocation6], 1
    %s1599 = scalar_lea.sflag [#allocation6], 1
    %1600 = vsyncpa %s1599, 1
    %1601 = vsyncpa [#allocation9], 1
    %1602 = vsyncpa [#allocation7], 1
    %s1603 = scalar_lea.sflag [#allocation7], 1
    %1604 = vsyncpa %s1603, 1

</llo_original>
